<compile_context>
chip_gen: v7x
topology: tpu7x:2x2x1
jax: 0.10.0
libtpu: 0.0.40
codegen_flags: <defaults>
</compile_context>

<pallas_src>
import math

import jax
import jax.numpy as jnp
from jax.experimental import pallas as pl
from jax.experimental.pallas import tpu as pltpu

# ----------------------------- config (scaled-down roberta-base) -------------
VOCAB = 100
MAX_POS = 40
TYPE_VOCAB = 2
HIDDEN = 32
N_HEADS = 4
HEAD_DIM = HIDDEN // N_HEADS
INTERMEDIATE = 64
N_LAYERS = 2
LN_EPS = 1e-5
PAD_TOKEN_ID = 1  # roberta padding_idx (also position padding_idx)

_ATTN_SCALE = 1.0 / math.sqrt(HEAD_DIM)
_GELU_C = math.sqrt(2.0 / math.pi)

# ------------------ packed small-parameter slab layout (per layer) -----------
# rows 0..11 cols[0:HEAD_DIM]      : q/k/v biases, per (q|k|v, head)
_ROW_BO    = 12   # cols[0:HIDDEN]
_ROW_LN1G  = 13
_ROW_LN1B  = 14
_ROW_BI    = 15   # cols[0:INTERMEDIATE]
_ROW_BO2   = 16
_ROW_LN2G  = 17
_ROW_LN2B  = 18
_ROW_EMB_G = 19   # embedding LayerNorm (replicated per layer; used at l==0)
_ROW_EMB_B = 20
_SLAB_ROWS = 24   # pad rows to a sublane multiple
_SLAB_LANES = max(HIDDEN, INTERMEDIATE)


# ----------------------------- kernel helpers ---------------------------------
def _layernorm(x, g, b):
    mu = jnp.mean(x, axis=-1, keepdims=True)
    xc = x - mu
    var = jnp.mean(xc * xc, axis=-1, keepdims=True)
    return xc * jax.lax.rsqrt(var + LN_EPS) * g + b


def _gelu_tanh(x):
    # tanh-approximate GELU (EUP slot) instead of exact erf.
    return 0.5 * x * (1.0 + jnp.tanh(_GELU_C * (x + 0.044715 * x * x * x)))


# ----------------------------- per-(batch, layer) kernel ----------------------
def _encoder_layer_kernel(emb_ref, mask_ref, wqkv_ref, wo_ref, wi_ref,
                          wo2_ref, sp_ref, out_ref, h_scr):
    l = pl.program_id(1)

    sp = sp_ref[0]                                              # [24, 64] f32
    bqkv = sp[0:3 * N_HEADS, 0:HEAD_DIM]                        # [12, dH]
    bo   = sp[_ROW_BO:_ROW_BO + 1,     0:HIDDEN]
    ln1g = sp[_ROW_LN1G:_ROW_LN1G + 1, 0:HIDDEN]
    ln1b = sp[_ROW_LN1B:_ROW_LN1B + 1, 0:HIDDEN]
    bi   = sp[_ROW_BI:_ROW_BI + 1,     0:INTERMEDIATE]
    bo2  = sp[_ROW_BO2:_ROW_BO2 + 1,   0:HIDDEN]
    ln2g = sp[_ROW_LN2G:_ROW_LN2G + 1, 0:HIDDEN]
    ln2b = sp[_ROW_LN2B:_ROW_LN2B + 1, 0:HIDDEN]
    eg   = sp[_ROW_EMB_G:_ROW_EMB_G + 1, 0:HIDDEN]
    eb   = sp[_ROW_EMB_B:_ROW_EMB_B + 1, 0:HIDDEN]

    # Layer 0: seed the carried activation with LayerNorm(embeddings).
    @pl.when(l == 0)
    def _():
        h_scr[...] = _layernorm(emb_ref[0], eg, eb)

    h = h_scr[...]                                              # [S, H] f32
    seq = h.shape[0]
    h_bf = h.astype(jnp.bfloat16)

    # ---- fused QKV: one batched matmul, heads on the leading (batch) dim ----
    x_g = jnp.broadcast_to(h_bf[None], (3 * N_HEADS, seq, HIDDEN))
    qkv = jnp.einsum('gsk,gkd->gsd', x_g, wqkv_ref[0],
                     preferred_element_type=jnp.float32)        # [12, S, dH]
    qkv = qkv + bqkv[:, None, :]
    q = qkv[0:N_HEADS]                                          # [nH, S, dH]
    k = qkv[N_HEADS:2 * N_HEADS]
    v = qkv[2 * N_HEADS:3 * N_HEADS]

    # ---- attention: batched matmuls, softmax kept in f32 --------------------
    s = jnp.einsum('hqd,hkd->hqk',
                   q.astype(jnp.bfloat16), k.astype(jnp.bfloat16),
                   preferred_element_type=jnp.float32)          # [nH, S, S]
    s = s * _ATTN_SCALE + mask_ref[0]                           # key-padding bias
    s = s - jnp.max(s, axis=-1, keepdims=True)
    p = jnp.exp(s)
    # approximate reciprocal (EUP): rows sum to 1 within ~1e-3 (inference-ok).
    p = p * pl.reciprocal(jnp.sum(p, axis=-1, keepdims=True), approx=True)
    ctx = jnp.einsum('hqk,hkd->hqd',
                     p.astype(jnp.bfloat16), v.astype(jnp.bfloat16),
                     preferred_element_type=jnp.float32)        # [nH, S, dH]
    # fold head-concat into the output projection: concat_h(ctx_h)@Wo == sum_h ctx_h@Wo[h]
    out_h = jnp.einsum('hqd,hdo->hqo',
                       ctx.astype(jnp.bfloat16), wo_ref[0],
                       preferred_element_type=jnp.float32)      # [nH, S, H]
    attn = jnp.sum(out_h, axis=0) + bo                          # [S, H]
    h1 = _layernorm(attn + h, ln1g, ln1b)

    # ---- feed-forward --------------------------------------------------------
    inter = jnp.dot(h1.astype(jnp.bfloat16), wi_ref[0],
                    preferred_element_type=jnp.float32) + bi
    inter = _gelu_tanh(inter)
    ffn = jnp.dot(inter.astype(jnp.bfloat16), wo2_ref[0],
                  preferred_element_type=jnp.float32) + bo2
    h2 = _layernorm(ffn + h1, ln2g, ln2b)

    h_scr[...] = h2                                             # carry to next layer

    # Only last_hidden_state[:, 0] is ever consumed -> write just the CLS row.
    @pl.when(l == N_LAYERS - 1)
    def _():
        out_ref[...] = h2[0:1, :].reshape(1, 1, HIDDEN).astype(out_ref.dtype)


# ----------------------------- parameters -------------------------------------
def init_params(key):
    def normal(k, shape):
        return jax.random.normal(k, shape, jnp.float32) * 0.02

    keys = iter(jax.random.split(key, 4 + N_LAYERS * 8))
    params = {
        "word_emb": normal(next(keys), (VOCAB, HIDDEN)),
        "pos_emb": normal(next(keys), (MAX_POS, HIDDEN)),
        "type_emb": normal(next(keys), (TYPE_VOCAB, HIDDEN)),
        "emb_ln_g": jnp.ones((HIDDEN,), jnp.float32),
        "emb_ln_b": jnp.zeros((HIDDEN,), jnp.float32),
        "layers": [],
    }
    for _ in range(N_LAYERS):
        layer = {
            "wq": normal(next(keys), (HIDDEN, HIDDEN)),
            "bq": jnp.zeros((HIDDEN,), jnp.float32),
            "wk": normal(next(keys), (HIDDEN, HIDDEN)),
            "bk": jnp.zeros((HIDDEN,), jnp.float32),
            "wv": normal(next(keys), (HIDDEN, HIDDEN)),
            "bv": jnp.zeros((HIDDEN,), jnp.float32),
            "wo": normal(next(keys), (HIDDEN, HIDDEN)),
            "bo": jnp.zeros((HIDDEN,), jnp.float32),
            "ln1_g": jnp.ones((HIDDEN,), jnp.float32),
            "ln1_b": jnp.zeros((HIDDEN,), jnp.float32),
            "wi": normal(next(keys), (HIDDEN, INTERMEDIATE)),
            "bi": jnp.zeros((INTERMEDIATE,), jnp.float32),
            "wo2": normal(next(keys), (INTERMEDIATE, HIDDEN)),
            "bo2": jnp.zeros((HIDDEN,), jnp.float32),
            "ln2_g": jnp.ones((HIDDEN,), jnp.float32),
            "ln2_b": jnp.zeros((HIDDEN,), jnp.float32),
        }
        params["layers"].append(layer)
    return params


def _pack_layer_weights(layers):
    """Per-head weight layout (bf16) so the kernel never lane-slices activations."""
    def heads_in(w):                                 # [H, H] -> [nH, H, dH]
        return w.reshape(HIDDEN, N_HEADS, HEAD_DIM).transpose(1, 0, 2)

    wqkv = jnp.stack([
        jnp.concatenate([heads_in(lyr["wq"]), heads_in(lyr["wk"]),
                         heads_in(lyr["wv"])], axis=0)          # [12, H, dH]
        for lyr in layers]).astype(jnp.bfloat16)                # [L, 12, H, dH]
    wo = jnp.stack([lyr["wo"].reshape(N_HEADS, HEAD_DIM, HIDDEN)
                    for lyr in layers]).astype(jnp.bfloat16)    # [L, nH, dH, H]
    wi = jnp.stack([lyr["wi"] for lyr in layers]).astype(jnp.bfloat16)   # [L, H, I]
    wo2 = jnp.stack([lyr["wo2"] for lyr in layers]).astype(jnp.bfloat16)  # [L, I, H]
    return wqkv, wo, wi, wo2


def _pack_small_params(params):
    """All biases / LayerNorm params for one layer in a single [24, 64] f32 slab."""
    slabs = []
    for lyr in params["layers"]:
        slab = jnp.zeros((_SLAB_ROWS, _SLAB_LANES), jnp.float32)
        bqkv = jnp.concatenate([lyr["bq"], lyr["bk"], lyr["bv"]]).reshape(
            3 * N_HEADS, HEAD_DIM)
        slab = slab.at[0:3 * N_HEADS, 0:HEAD_DIM].set(bqkv)
        slab = slab.at[_ROW_BO,    0:HIDDEN].set(lyr["bo"])
        slab = slab.at[_ROW_LN1G,  0:HIDDEN].set(lyr["ln1_g"])
        slab = slab.at[_ROW_LN1B,  0:HIDDEN].set(lyr["ln1_b"])
        slab = slab.at[_ROW_BI,    0:INTERMEDIATE].set(lyr["bi"])
        slab = slab.at[_ROW_BO2,   0:HIDDEN].set(lyr["bo2"])
        slab = slab.at[_ROW_LN2G,  0:HIDDEN].set(lyr["ln2_g"])
        slab = slab.at[_ROW_LN2B,  0:HIDDEN].set(lyr["ln2_b"])
        slab = slab.at[_ROW_EMB_G, 0:HIDDEN].set(params["emb_ln_g"])
        slab = slab.at[_ROW_EMB_B, 0:HIDDEN].set(params["emb_ln_b"])
        slabs.append(slab)
    return jnp.stack(slabs)                                     # [L, 24, 64]


# ----------------------------- forward -----------------------------------------
def roberta_forward(params, input_ids, attention_mask, token_type_ids):
    """Returns last_hidden_state[:, 0] (shape [B, HIDDEN]), like the torch module."""
    B, S = input_ids.shape
    mask_i = attention_mask.astype(jnp.int32)
    maskf = attention_mask.astype(jnp.float32)

    # RoBERTa position ids: cumsum(mask)*mask + padding_idx
    pos_ids = jnp.cumsum(mask_i, axis=1) * mask_i + PAD_TOKEN_ID

    # TODO(synk): at real scale move the three embedding gathers into the kernel
    # (scalar-prefetch ids + pl.Element row gather); tiny tables here, so the
    # gathers stay in XLA.
    emb = (params["word_emb"][input_ids]
           + params["pos_emb"][pos_ids]
           + params["type_emb"][token_type_ids]).astype(jnp.float32)   # [B, S, H]

    # Additive key-padding bias, computed once for all layers/heads.
    mask_bias = ((1.0 - maskf) * (-1e9)).reshape(B, 1, S)               # [B, 1, S]

    wqkv, wo, wi, wo2 = _pack_layer_weights(params["layers"])
    slab = _pack_small_params(params)

    out = pl.pallas_call(
        _encoder_layer_kernel,
        out_shape=jax.ShapeDtypeStruct((B, 1, HIDDEN), jnp.float32),
        grid_spec=pltpu.PrefetchScalarGridSpec(
            num_scalar_prefetch=0,
            grid=(B, N_LAYERS),
            in_specs=[
                pl.BlockSpec((1, S, HIDDEN), lambda b, l: (b, 0, 0)),      # emb
                pl.BlockSpec((1, 1, S), lambda b, l: (b, 0, 0)),           # mask bias
                pl.BlockSpec((1, 3 * N_HEADS, HIDDEN, HEAD_DIM),
                             lambda b, l: (l, 0, 0, 0)),                   # Wqkv (heads)
                pl.BlockSpec((1, N_HEADS, HEAD_DIM, HIDDEN),
                             lambda b, l: (l, 0, 0, 0)),                   # Wo (heads)
                pl.BlockSpec((1, HIDDEN, INTERMEDIATE),
                             lambda b, l: (l, 0, 0)),                      # W_ffn_in
                pl.BlockSpec((1, INTERMEDIATE, HIDDEN),
                             lambda b, l: (l, 0, 0)),                      # W_ffn_out
                pl.BlockSpec((1, _SLAB_ROWS, _SLAB_LANES),
                             lambda b, l: (l, 0, 0)),                      # small params
            ],
            out_specs=pl.BlockSpec((1, 1, HIDDEN), lambda b, l: (b, 0, 0)),
            scratch_shapes=[pltpu.VMEM((S, HIDDEN), jnp.float32)],         # carried act
        ),
        compiler_params=pltpu.CompilerParams(
            dimension_semantics=("parallel", "arbitrary")),
    )(emb, mask_bias, wqkv, wo, wi, wo2, slab)

    return out.reshape(B, HIDDEN)                                          # CLS (<s>)


# ----------------------------- main ---------------------------------------------
if __name__ == "__main__":
    key = jax.random.PRNGKey(0)
    pkey, dkey = jax.random.split(key)
    params = init_params(pkey)

    B, S = 2, 8
    # TODO(synk): RobertaTokenizer (string -> ids) has no Pallas/JAX equivalent;
    # the kernel consumes pre-tokenized integer ids / attention mask instead.
    input_ids = jax.random.randint(dkey, (B, S), 2, VOCAB)
    input_ids = input_ids.at[:, 0].set(0)                            # <s> token id
    attention_mask = jnp.ones((B, S), jnp.int32).at[1, 6:].set(0)    # pad batch 1
    input_ids = jnp.where(attention_mask == 1, input_ids, PAD_TOKEN_ID)
    token_type_ids = jnp.zeros((B, S), jnp.int32)

    fwd = jax.jit(roberta_forward)
    out = fwd(params, input_ids, attention_mask, token_type_ids)
    out = jax.block_until_ready(out)
    assert out.shape == (B, HIDDEN) and out.dtype == jnp.float32
    assert bool(jnp.all(jnp.isfinite(out)))
    print("KERNEL_OK")
</pallas_src>

<mosaic_0001>
module attributes {stable_mosaic.version = 11 : i64} {
  func.func @_encoder_layer_kernel(%arg0: i32, %arg1: i32, %arg2: memref<1x8x32xf32, #tpu.memory_space<vmem>>, %arg3: memref<1x1x8xf32, #tpu.memory_space<vmem>>, %arg4: memref<1x12x32x8xbf16, #tpu.memory_space<vmem>>, %arg5: memref<1x4x8x32xbf16, #tpu.memory_space<vmem>>, %arg6: memref<1x32x64xbf16, #tpu.memory_space<vmem>>, %arg7: memref<1x64x32xbf16, #tpu.memory_space<vmem>>, %arg8: memref<1x24x64xf32, #tpu.memory_space<vmem>>, %arg9: memref<1x1x32xf32, #tpu.memory_space<vmem>>, %arg10: memref<8x32xf32, #tpu.memory_space<vmem>>) attributes {dimension_semantics = [#tpu.dimension_semantics<parallel>, #tpu.dimension_semantics<arbitrary>], iteration_bounds = array<i64: 2, 2>, scalar_prefetch = 0 : i64, scratch_operands = 1 : i64, tpu.core_type = #tpu.core_type<tc>, window_params = [{transform_indices = @transform_0, window_bounds = array<i64: 1, 8, 32>}, {transform_indices = @transform_1, window_bounds = array<i64: 1, 1, 8>}, {transform_indices = @transform_2, window_bounds = array<i64: 1, 12, 32, 8>}, {transform_indices = @transform_3, window_bounds = array<i64: 1, 4, 8, 32>}, {transform_indices = @transform_4, window_bounds = array<i64: 1, 32, 64>}, {transform_indices = @transform_5, window_bounds = array<i64: 1, 64, 32>}, {transform_indices = @transform_6, window_bounds = array<i64: 1, 24, 64>}, {transform_indices = @transform_7, window_bounds = array<i64: 1, 1, 32>}]} {
    %c0 = arith.constant 0 : index
    %c0_0 = arith.constant 0 : index
    %c0_1 = arith.constant 0 : index
    %0 = vector.load %arg8[%c0, %c0_0, %c0_1] : memref<1x24x64xf32, #tpu.memory_space<vmem>>, vector<1x24x64xf32>
    %1 = vector.shape_cast %0 : vector<1x24x64xf32> to vector<24x64xf32>
    %2 = vector.extract_strided_slice %1 {offsets = [0, 0], sizes = [12, 8], strides = [1, 1]} : vector<24x64xf32> to vector<12x8xf32>
    %3 = vector.extract_strided_slice %1 {offsets = [12, 0], sizes = [1, 32], strides = [1, 1]} : vector<24x64xf32> to vector<1x32xf32>
    %4 = vector.extract_strided_slice %1 {offsets = [13, 0], sizes = [1, 32], strides = [1, 1]} : vector<24x64xf32> to vector<1x32xf32>
    %5 = vector.extract_strided_slice %1 {offsets = [14, 0], sizes = [1, 32], strides = [1, 1]} : vector<24x64xf32> to vector<1x32xf32>
    %6 = vector.extract_strided_slice %1 {offsets = [15, 0], sizes = [1, 64], strides = [1, 1]} : vector<24x64xf32> to vector<1x64xf32>
    %7 = vector.extract_strided_slice %1 {offsets = [16, 0], sizes = [1, 32], strides = [1, 1]} : vector<24x64xf32> to vector<1x32xf32>
    %8 = vector.extract_strided_slice %1 {offsets = [17, 0], sizes = [1, 32], strides = [1, 1]} : vector<24x64xf32> to vector<1x32xf32>
    %9 = vector.extract_strided_slice %1 {offsets = [18, 0], sizes = [1, 32], strides = [1, 1]} : vector<24x64xf32> to vector<1x32xf32>
    %10 = vector.extract_strided_slice %1 {offsets = [19, 0], sizes = [1, 32], strides = [1, 1]} : vector<24x64xf32> to vector<1x32xf32>
    %11 = vector.extract_strided_slice %1 {offsets = [20, 0], sizes = [1, 32], strides = [1, 1]} : vector<24x64xf32> to vector<1x32xf32>
    %c0_i32 = arith.constant 0 : i32
    %12 = arith.cmpi eq, %arg1, %c0_i32 : i32
    %13 = arith.extui %12 : i1 to i32
    %c0_i32_2 = arith.constant 0 : i32
    %14 = arith.cmpi ne, %13, %c0_i32_2 : i32
    scf.if %14 {
      %c0_48 = arith.constant 0 : index
      %c0_49 = arith.constant 0 : index
      %c0_50 = arith.constant 0 : index
      %130 = vector.load %arg2[%c0_48, %c0_49, %c0_50] : memref<1x8x32xf32, #tpu.memory_space<vmem>>, vector<1x8x32xf32>
      %131 = vector.shape_cast %130 : vector<1x8x32xf32> to vector<8x32xf32>
      %cst_51 = arith.constant dense<0.000000e+00> : vector<8xf32>
      %132 = vector.multi_reduction <add>, %131, %cst_51 [1] : vector<8x32xf32> to vector<8xf32>
      %133 = vector.shape_cast %132 : vector<8xf32> to vector<8x1xf32>
      %cst_52 = arith.constant 3.200000e+01 : f32
      %134 = vector.broadcast %cst_52 : f32 to vector<8x1xf32>
      %135 = arith.divf %133, %134 : vector<8x1xf32>
      %136 = vector.broadcast %135 : vector<8x1xf32> to vector<8x32xf32>
      %137 = arith.subf %131, %136 : vector<8x32xf32>
      %138 = arith.mulf %137, %137 : vector<8x32xf32>
      %cst_53 = arith.constant dense<0.000000e+00> : vector<8xf32>
      %139 = vector.multi_reduction <add>, %138, %cst_53 [1] : vector<8x32xf32> to vector<8xf32>
      %140 = vector.shape_cast %139 : vector<8xf32> to vector<8x1xf32>
      %cst_54 = arith.constant 3.200000e+01 : f32
      %141 = vector.broadcast %cst_54 : f32 to vector<8x1xf32>
      %142 = arith.divf %140, %141 : vector<8x1xf32>
      %cst_55 = arith.constant 9.99999974E-6 : f32
      %143 = vector.broadcast %cst_55 : f32 to vector<8x1xf32>
      %144 = arith.addf %142, %143 : vector<8x1xf32>
      %145 = math.rsqrt %144 : vector<8x1xf32>
      %146 = vector.broadcast %145 : vector<8x1xf32> to vector<8x32xf32>
      %147 = arith.mulf %137, %146 : vector<8x32xf32>
      %148 = vector.broadcast %10 : vector<1x32xf32> to vector<8x32xf32>
      %149 = arith.mulf %147, %148 : vector<8x32xf32>
      %150 = vector.broadcast %11 : vector<1x32xf32> to vector<8x32xf32>
      %151 = arith.addf %149, %150 : vector<8x32xf32>
      %c0_56 = arith.constant 0 : index
      %c0_57 = arith.constant 0 : index
      %152 = vector.load %arg10[%c0_56, %c0_57] : memref<8x32xf32, #tpu.memory_space<vmem>>, vector<8x32xf32>
      tpu.vector_store %arg10[%c0_56, %c0_57], %151 {strides = array<i32>} : memref<8x32xf32, #tpu.memory_space<vmem>>, vector<8x32xf32>,
    } else {
    }
    %c0_3 = arith.constant 0 : index
    %c0_4 = arith.constant 0 : index
    %15 = vector.load %arg10[%c0_3, %c0_4] : memref<8x32xf32, #tpu.memory_space<vmem>>, vector<8x32xf32>
    %16 = arith.truncf %15 : vector<8x32xf32> to vector<8x32xbf16>
    %17 = vector.shape_cast %16 : vector<8x32xbf16> to vector<1x8x32xbf16>
    %18 = vector.shape_cast %17 : vector<1x8x32xbf16> to vector<1x8x32xbf16>
    %19 = vector.broadcast %18 : vector<1x8x32xbf16> to vector<12x8x32xbf16>
    %c0_5 = arith.constant 0 : index
    %c0_6 = arith.constant 0 : index
    %c0_7 = arith.constant 0 : index
    %c0_8 = arith.constant 0 : index
    %20 = vector.load %arg4[%c0_5, %c0_6, %c0_7, %c0_8] : memref<1x12x32x8xbf16, #tpu.memory_space<vmem>>, vector<1x12x32x8xbf16>
    %21 = vector.shape_cast %20 : vector<1x12x32x8xbf16> to vector<12x32x8xbf16>
    "tpu.trace_start"() <{level = 10 : i32, message = "gsk,gkd->gsd"}> : () -> ()
    %cst = arith.constant dense<0.000000e+00> : vector<12x8x8xf32>
    %22 = tpu.matmul %19, %21, %cst {dimension_numbers = #tpu.dot_dimension_numbers<[2], [1], [1], [2], [0, 0, 0, 1, 1, 2], [0], [0]>} : vector<12x8x32xbf16>, vector<12x32x8xbf16>, vector<12x8x8xf32> -> vector<12x8x8xf32>
    "tpu.trace_stop"() : () -> ()
    %23 = vector.shape_cast %2 : vector<12x8xf32> to vector<12x1x8xf32>
    %24 = vector.broadcast %23 : vector<12x1x8xf32> to vector<12x8x8xf32>
    %25 = arith.addf %22, %24 : vector<12x8x8xf32>
    %26 = vector.extract_strided_slice %25 {offsets = [0, 0, 0], sizes = [4, 8, 8], strides = [1, 1, 1]} : vector<12x8x8xf32> to vector<4x8x8xf32>
    %27 = vector.extract_strided_slice %25 {offsets = [4, 0, 0], sizes = [4, 8, 8], strides = [1, 1, 1]} : vector<12x8x8xf32> to vector<4x8x8xf32>
    %28 = vector.extract_strided_slice %25 {offsets = [8, 0, 0], sizes = [4, 8, 8], strides = [1, 1, 1]} : vector<12x8x8xf32> to vector<4x8x8xf32>
    %29 = arith.truncf %26 : vector<4x8x8xf32> to vector<4x8x8xbf16>
    %30 = arith.truncf %27 : vector<4x8x8xf32> to vector<4x8x8xbf16>
    "tpu.trace_start"() <{level = 10 : i32, message = "hqd,hkd->hqk"}> : () -> ()
    %cst_9 = arith.constant dense<0.000000e+00> : vector<4x8x8xf32>
    %31 = tpu.matmul %29, %30, %cst_9 {dimension_numbers = #tpu.dot_dimension_numbers<[2], [2], [1], [1], [0, 0, 0, 1, 1, 1], [0], [0]>} : vector<4x8x8xbf16>, vector<4x8x8xbf16>, vector<4x8x8xf32> -> vector<4x8x8xf32>
    "tpu.trace_stop"() : () -> ()
    %cst_10 = arith.constant 0.353553385 : f32
    %32 = vector.broadcast %cst_10 : f32 to vector<4x8x8xf32>
    %33 = arith.mulf %31, %32 : vector<4x8x8xf32>
    %c0_11 = arith.constant 0 : index
    %c0_12 = arith.constant 0 : index
    %c0_13 = arith.constant 0 : index
    %34 = vector.load %arg3[%c0_11, %c0_12, %c0_13] : memref<1x1x8xf32, #tpu.memory_space<vmem>>, vector<1x1x8xf32>
    %35 = vector.shape_cast %34 : vector<1x1x8xf32> to vector<1x8xf32>
    %36 = vector.shape_cast %35 : vector<1x8xf32> to vector<1x1x8xf32>
    %37 = vector.broadcast %36 : vector<1x1x8xf32> to vector<4x8x8xf32>
    %38 = arith.addf %33, %37 : vector<4x8x8xf32>
    %cst_14 = arith.constant dense<0xFF800000> : vector<4x8xf32>
    %39 = vector.multi_reduction <maximumf>, %38, %cst_14 [2] : vector<4x8x8xf32> to vector<4x8xf32>
    %40 = vector.shape_cast %39 : vector<4x8xf32> to vector<4x8x1xf32>
    %41 = vector.broadcast %40 : vector<4x8x1xf32> to vector<4x8x8xf32>
    %42 = arith.subf %38, %41 : vector<4x8x8xf32>
    %43 = math.exp %42 : vector<4x8x8xf32>
    %cst_15 = arith.constant dense<0.000000e+00> : vector<4x8xf32>
    %44 = vector.multi_reduction <add>, %43, %cst_15 [2] : vector<4x8x8xf32> to vector<4x8xf32>
    %45 = vector.shape_cast %44 : vector<4x8xf32> to vector<4x8x1xf32>
    %46 = tpu.reciprocal %45 {approx = true} : vector<4x8x1xf32> -> vector<4x8x1xf32>
    %47 = vector.broadcast %46 : vector<4x8x1xf32> to vector<4x8x8xf32>
    %48 = arith.mulf %43, %47 : vector<4x8x8xf32>
    %49 = arith.truncf %48 : vector<4x8x8xf32> to vector<4x8x8xbf16>
    %50 = arith.truncf %28 : vector<4x8x8xf32> to vector<4x8x8xbf16>
    "tpu.trace_start"() <{level = 10 : i32, message = "hqk,hkd->hqd"}> : () -> ()
    %cst_16 = arith.constant dense<0.000000e+00> : vector<4x8x8xf32>
    %51 = tpu.matmul %49, %50, %cst_16 {dimension_numbers = #tpu.dot_dimension_numbers<[2], [1], [1], [2], [0, 0, 0, 1, 1, 2], [0], [0]>} : vector<4x8x8xbf16>, vector<4x8x8xbf16>, vector<4x8x8xf32> -> vector<4x8x8xf32>
    "tpu.trace_stop"() : () -> ()
    %52 = arith.truncf %51 : vector<4x8x8xf32> to vector<4x8x8xbf16>
    %c0_17 = arith.constant 0 : index
    %c0_18 = arith.constant 0 : index
    %c0_19 = arith.constant 0 : index
    %c0_20 = arith.constant 0 : index
    %53 = vector.load %arg5[%c0_17, %c0_18, %c0_19, %c0_20] : memref<1x4x8x32xbf16, #tpu.memory_space<vmem>>, vector<1x4x8x32xbf16>
    %54 = vector.shape_cast %53 : vector<1x4x8x32xbf16> to vector<4x8x32xbf16>
    "tpu.trace_start"() <{level = 10 : i32, message = "hqd,hdo->hqo"}> : () -> ()
    %cst_21 = arith.constant dense<0.000000e+00> : vector<4x8x32xf32>
    %55 = tpu.matmul %52, %54, %cst_21 {dimension_numbers = #tpu.dot_dimension_numbers<[2], [1], [1], [2], [0, 0, 0, 1, 1, 2], [0], [0]>} : vector<4x8x8xbf16>, vector<4x8x32xbf16>, vector<4x8x32xf32> -> vector<4x8x32xf32>
    "tpu.trace_stop"() : () -> ()
    %cst_22 = arith.constant dense<0.000000e+00> : vector<8x32xf32>
    %56 = vector.multi_reduction <add>, %55, %cst_22 [0] : vector<4x8x32xf32> to vector<8x32xf32>
    %57 = vector.broadcast %3 : vector<1x32xf32> to vector<8x32xf32>
    %58 = arith.addf %56, %57 : vector<8x32xf32>
    %59 = arith.addf %58, %15 : vector<8x32xf32>
    %cst_23 = arith.constant dense<0.000000e+00> : vector<8xf32>
    %60 = vector.multi_reduction <add>, %59, %cst_23 [1] : vector<8x32xf32> to vector<8xf32>
    %61 = vector.shape_cast %60 : vector<8xf32> to vector<8x1xf32>
    %cst_24 = arith.constant 3.200000e+01 : f32
    %62 = vector.broadcast %cst_24 : f32 to vector<8x1xf32>
    %63 = arith.divf %61, %62 : vector<8x1xf32>
    %64 = vector.broadcast %63 : vector<8x1xf32> to vector<8x32xf32>
    %65 = arith.subf %59, %64 : vector<8x32xf32>
    %66 = arith.mulf %65, %65 : vector<8x32xf32>
    %cst_25 = arith.constant dense<0.000000e+00> : vector<8xf32>
    %67 = vector.multi_reduction <add>, %66, %cst_25 [1] : vector<8x32xf32> to vector<8xf32>
    %68 = vector.shape_cast %67 : vector<8xf32> to vector<8x1xf32>
    %cst_26 = arith.constant 3.200000e+01 : f32
    %69 = vector.broadcast %cst_26 : f32 to vector<8x1xf32>
    %70 = arith.divf %68, %69 : vector<8x1xf32>
    %cst_27 = arith.constant 9.99999974E-6 : f32
    %71 = vector.broadcast %cst_27 : f32 to vector<8x1xf32>
    %72 = arith.addf %70, %71 : vector<8x1xf32>
    %73 = math.rsqrt %72 : vector<8x1xf32>
    %74 = vector.broadcast %73 : vector<8x1xf32> to vector<8x32xf32>
    %75 = arith.mulf %65, %74 : vector<8x32xf32>
    %76 = vector.broadcast %4 : vector<1x32xf32> to vector<8x32xf32>
    %77 = arith.mulf %75, %76 : vector<8x32xf32>
    %78 = vector.broadcast %5 : vector<1x32xf32> to vector<8x32xf32>
    %79 = arith.addf %77, %78 : vector<8x32xf32>
    %80 = arith.truncf %79 : vector<8x32xf32> to vector<8x32xbf16>
    %c0_28 = arith.constant 0 : index
    %c0_29 = arith.constant 0 : index
    %c0_30 = arith.constant 0 : index
    %81 = vector.load %arg6[%c0_28, %c0_29, %c0_30] : memref<1x32x64xbf16, #tpu.memory_space<vmem>>, vector<1x32x64xbf16>
    %82 = vector.shape_cast %81 : vector<1x32x64xbf16> to vector<32x64xbf16>
    %cst_31 = arith.constant dense<0.000000e+00> : vector<8x64xf32>
    %83 = tpu.matmul %80, %82, %cst_31 {dimension_numbers = #tpu.dot_dimension_numbers<[1], [0], [0], [1], [0, 0, 1, 1], [], []>} : vector<8x32xbf16>, vector<32x64xbf16>, vector<8x64xf32> -> vector<8x64xf32>
    %84 = vector.broadcast %6 : vector<1x64xf32> to vector<8x64xf32>
    %85 = arith.addf %83, %84 : vector<8x64xf32>
    %cst_32 = arith.constant 5.000000e-01 : f32
    %86 = vector.broadcast %cst_32 : f32 to vector<8x64xf32>
    %87 = arith.mulf %86, %85 : vector<8x64xf32>
    %cst_33 = arith.constant 4.471500e-02 : f32
    %88 = vector.broadcast %cst_33 : f32 to vector<8x64xf32>
    %89 = arith.mulf %88, %85 : vector<8x64xf32>
    %90 = arith.mulf %89, %85 : vector<8x64xf32>
    %91 = arith.mulf %90, %85 : vector<8x64xf32>
    %92 = arith.addf %85, %91 : vector<8x64xf32>
    %cst_34 = arith.constant 0.797884583 : f32
    %93 = vector.broadcast %cst_34 : f32 to vector<8x64xf32>
    %94 = arith.mulf %93, %92 : vector<8x64xf32>
    %95 = math.tanh %94 : vector<8x64xf32>
    %cst_35 = arith.constant 1.000000e+00 : f32
    %96 = vector.broadcast %cst_35 : f32 to vector<8x64xf32>
    %97 = arith.addf %96, %95 : vector<8x64xf32>
    %98 = arith.mulf %87, %97 : vector<8x64xf32>
    %99 = arith.truncf %98 : vector<8x64xf32> to vector<8x64xbf16>
    %c0_36 = arith.constant 0 : index
    %c0_37 = arith.constant 0 : index
    %c0_38 = arith.constant 0 : index
    %100 = vector.load %arg7[%c0_36, %c0_37, %c0_38] : memref<1x64x32xbf16, #tpu.memory_space<vmem>>, vector<1x64x32xbf16>
    %101 = vector.shape_cast %100 : vector<1x64x32xbf16> to vector<64x32xbf16>
    %cst_39 = arith.constant dense<0.000000e+00> : vector<8x32xf32>
    %102 = tpu.matmul %99, %101, %cst_39 {dimension_numbers = #tpu.dot_dimension_numbers<[1], [0], [0], [1], [0, 0, 1, 1], [], []>} : vector<8x64xbf16>, vector<64x32xbf16>, vector<8x32xf32> -> vector<8x32xf32>
    %103 = vector.broadcast %7 : vector<1x32xf32> to vector<8x32xf32>
    %104 = arith.addf %102, %103 : vector<8x32xf32>
    %105 = arith.addf %104, %79 : vector<8x32xf32>
    %cst_40 = arith.constant dense<0.000000e+00> : vector<8xf32>
    %106 = vector.multi_reduction <add>, %105, %cst_40 [1] : vector<8x32xf32> to vector<8xf32>
    %107 = vector.shape_cast %106 : vector<8xf32> to vector<8x1xf32>
    %cst_41 = arith.constant 3.200000e+01 : f32
    %108 = vector.broadcast %cst_41 : f32 to vector<8x1xf32>
    %109 = arith.divf %107, %108 : vector<8x1xf32>
    %110 = vector.broadcast %109 : vector<8x1xf32> to vector<8x32xf32>
    %111 = arith.subf %105, %110 : vector<8x32xf32>
    %112 = arith.mulf %111, %111 : vector<8x32xf32>
    %cst_42 = arith.constant dense<0.000000e+00> : vector<8xf32>
    %113 = vector.multi_reduction <add>, %112, %cst_42 [1] : vector<8x32xf32> to vector<8xf32>
    %114 = vector.shape_cast %113 : vector<8xf32> to vector<8x1xf32>
    %cst_43 = arith.constant 3.200000e+01 : f32
    %115 = vector.broadcast %cst_43 : f32 to vector<8x1xf32>
    %116 = arith.divf %114, %115 : vector<8x1xf32>
    %cst_44 = arith.constant 9.99999974E-6 : f32
    %117 = vector.broadcast %cst_44 : f32 to vector<8x1xf32>
    %118 = arith.addf %116, %117 : vector<8x1xf32>
    %119 = math.rsqrt %118 : vector<8x1xf32>
    %120 = vector.broadcast %119 : vector<8x1xf32> to vector<8x32xf32>
    %121 = arith.mulf %111, %120 : vector<8x32xf32>
    %122 = vector.broadcast %8 : vector<1x32xf32> to vector<8x32xf32>
    %123 = arith.mulf %121, %122 : vector<8x32xf32>
    %124 = vector.broadcast %9 : vector<1x32xf32> to vector<8x32xf32>
    %125 = arith.addf %123, %124 : vector<8x32xf32>
    %c0_45 = arith.constant 0 : index
    %c0_46 = arith.constant 0 : index
    %126 = vector.load %arg10[%c0_45, %c0_46] : memref<8x32xf32, #tpu.memory_space<vmem>>, vector<8x32xf32>
    tpu.vector_store %arg10[%c0_45, %c0_46], %125 {strides = array<i32>} : memref<8x32xf32, #tpu.memory_space<vmem>>, vector<8x32xf32>,
    %c1_i32 = arith.constant 1 : i32
    %127 = arith.cmpi eq, %arg1, %c1_i32 : i32
    %128 = arith.extui %127 : i1 to i32
    %c0_i32_47 = arith.constant 0 : i32
    %129 = arith.cmpi ne, %128, %c0_i32_47 : i32
    scf.if %129 {
      %130 = vector.extract_strided_slice %125 {offsets = [0, 0], sizes = [1, 32], strides = [1, 1]} : vector<8x32xf32> to vector<1x32xf32>
      %131 = vector.shape_cast %130 : vector<1x32xf32> to vector<1x1x32xf32>
      %c0_48 = arith.constant 0 : index
      %c0_49 = arith.constant 0 : index
      %c0_50 = arith.constant 0 : index
      %132 = vector.load %arg9[%c0_48, %c0_49, %c0_50] : memref<1x1x32xf32, #tpu.memory_space<vmem>>, vector<1x1x32xf32>
      tpu.vector_store %arg9[%c0_48, %c0_49, %c0_50], %131 {strides = array<i32>} : memref<1x1x32xf32, #tpu.memory_space<vmem>>, vector<1x1x32xf32>,
    } else {
    }
    return
  }
  func.func @transform_0(%arg0: i32, %arg1: i32) -> (i32, i32, i32) {
    %c0_i32 = arith.constant 0 : i32
    %c0_i32_0 = arith.constant 0 : i32
    %c0_i32_1 = arith.constant 0 : i32
    return %arg0, %c0_i32, %c0_i32_0 : i32, i32, i32
  }
  func.func @transform_1(%arg0: i32, %arg1: i32) -> (i32, i32, i32) {
    %c0_i32 = arith.constant 0 : i32
    %c0_i32_0 = arith.constant 0 : i32
    %c0_i32_1 = arith.constant 0 : i32
    return %arg0, %c0_i32, %c0_i32_0 : i32, i32, i32
  }
  func.func @transform_2(%arg0: i32, %arg1: i32) -> (i32, i32, i32, i32) {
    %c0_i32 = arith.constant 0 : i32
    %c0_i32_0 = arith.constant 0 : i32
    %c0_i32_1 = arith.constant 0 : i32
    %c0_i32_2 = arith.constant 0 : i32
    return %arg1, %c0_i32, %c0_i32_0, %c0_i32_1 : i32, i32, i32, i32
  }
  func.func @transform_3(%arg0: i32, %arg1: i32) -> (i32, i32, i32, i32) {
    %c0_i32 = arith.constant 0 : i32
    %c0_i32_0 = arith.constant 0 : i32
    %c0_i32_1 = arith.constant 0 : i32
    %c0_i32_2 = arith.constant 0 : i32
    return %arg1, %c0_i32, %c0_i32_0, %c0_i32_1 : i32, i32, i32, i32
  }
  func.func @transform_4(%arg0: i32, %arg1: i32) -> (i32, i32, i32) {
    %c0_i32 = arith.constant 0 : i32
    %c0_i32_0 = arith.constant 0 : i32
    %c0_i32_1 = arith.constant 0 : i32
    return %arg1, %c0_i32, %c0_i32_0 : i32, i32, i32
  }
  func.func @transform_5(%arg0: i32, %arg1: i32) -> (i32, i32, i32) {
    %c0_i32 = arith.constant 0 : i32
    %c0_i32_0 = arith.constant 0 : i32
    %c0_i32_1 = arith.constant 0 : i32
    return %arg1, %c0_i32, %c0_i32_0 : i32, i32, i32
  }
  func.func @transform_6(%arg0: i32, %arg1: i32) -> (i32, i32, i32) {
    %c0_i32 = arith.constant 0 : i32
    %c0_i32_0 = arith.constant 0 : i32
    %c0_i32_1 = arith.constant 0 : i32
    return %arg1, %c0_i32, %c0_i32_0 : i32, i32, i32
  }
  func.func @transform_7(%arg0: i32, %arg1: i32) -> (i32, i32, i32) {
    %c0_i32 = arith.constant 0 : i32
    %c0_i32_0 = arith.constant 0 : i32
    %c0_i32_1 = arith.constant 0 : i32
    return %arg0, %c0_i32, %c0_i32_0 : i32, i32, i32
  }
}

</mosaic_0001>

<llo_original>
// kernel: roberta_forward.1
$region0: #{roberta_forward.1}
  #allocation0 [shape = 'u32[]', space=smem, size = 0x4, offset = 0x4, fixed_abs, tag = 'smem constant byte address 0x4 - core index']
  #allocation1 [shape = 'u32[144,128]{1,0:T(1,128)}', space=vmem, size = 0x12000, scoped, tag = 'internal scratch']
  #allocation2 [shape = 'f32[8,32]{1,0:T(8,128)}', space=vmem, size = 0x1000, scoped, tag = 'scratch operand']
  %s0 = inlined_call_operand.vmem [shape: f32[2,8,32], index: 0, kind: input, shape index: {}]
  %s1 = inlined_call_operand.vmem [shape: f32[2,1,8], index: 1, kind: input, shape index: {}]
  %s2 = inlined_call_operand.vmem [shape: bf16[2,12,32,8], index: 2, kind: input, shape index: {}]
  %s3 = inlined_call_operand.vmem [shape: bf16[2,4,8,32], index: 3, kind: input, shape index: {}]
  %s4 = inlined_call_operand.vmem [shape: bf16[2,32,64], index: 4, kind: input, shape index: {}]
  %s5 = inlined_call_operand.vmem [shape: bf16[2,64,32], index: 5, kind: input, shape index: {}]
  %s6 = inlined_call_operand.vmem [shape: f32[2,24,64], index: 6, kind: input, shape index: {}]
  %s7 = inlined_call_operand.hbm [shape: f32[2,1,32], index: 7, kind: output, shape index: {}]
  %s8 = sld [smem:[#allocation0]]
  $region69: #{roberta_forward.1} parent=0
    _
  %s10 = ssub.s32 1, %s8
  %s11 = scalar_select 0, %s10, %s8
  $region1: #{roberta_forward.1} parent=0
    #allocation3 [shape = 'u8[1024]{0}', space=vmem, size = 0x400, scoped, tag = 'output window, operand 0']
    #allocation4 [shape = 's32[2]{0}', space=sflag, size = 0x8, scoped, tag = 'scoped memory for roberta_forward.1']
    %12 = vsyncpa [#allocation4], 0
    %s13 = scalar_lea.sflag [#allocation4], 1
    %14 = vsyncpa %s13, 0
    loop: start=0, step=1, limit=6
    $region2: #{roberta_forward.1} parent=1 // loop_pre_header
      _
    $region3: #{roberta_forward.1} parent=1 // loop_header
      %s16 = sphi 0, %s20
      %p17 = scmp.ge.s32.totalorder %s16, 6
      %s23 = sphi 0, %s35
      %s24 = sphi 0, %s31
      %s25 = sphi 0, %s23
      %s26 = sphi 0, %s24
      %s27 = sphi 0, %s25
      %s28 = sphi 0, %s26
      %s38 = sphi 0, %s40
      %s41 = sphi 0, %s38
      %s42 = sphi 0, %s41
      %s58 = sphi 0, %s42
      %s64 = sphi 0, %s66
      %s67 = sphi 0, %s64
      %s68 = sphi 0, %s67
      %s84 = sphi 0, %s68
      %s90 = sphi 0, %s92
      %s93 = sphi 0, %s90
      %s94 = sphi 0, %s93
      %s110 = sphi 0, %s94
      %s116 = sphi 0, %s118
      %s119 = sphi 0, %s116
      %s120 = sphi 0, %s119
      %s136 = sphi 0, %s120
      %s142 = sphi 0, %s144
      %s145 = sphi 0, %s142
      %s146 = sphi 0, %s145
      %s162 = sphi 0, %s146
      %s168 = sphi 0, %s170
      %s171 = sphi 0, %s168
      %s172 = sphi 0, %s171
      %s188 = sphi 0, %s172
      %s194 = sphi 0, %s196
      %s197 = sphi 0, %s194
      %s198 = sphi 0, %s197
      %s214 = sphi 0, %s198
      %s220 = sphi 0, %s222
      %s223 = sphi 0, %s220
      %s224 = sphi 0, %s223
      %s240 = sphi 0, %s224
    $region4: #{roberta_forward.1} parent=1 // loop_header_branch
      %19 = sbr.rel (%p17) target = $region8
    $region5: #{roberta_forward.1} parent=1 // loop_body
      %s21 = ssub.s32 %s16, 1
      %s22 = ssub.s32 %s16, 2
      %s29 = sadd.s32 1, %s24
      %p30 = scmp.ge.s32.totalorder %s29, 2
      %s31 = scalar_select %p30, 0, %s29
      %s32 = sadd.s32 1, %s23
      %s33 = scalar_select %p30, %s32, %s23
      %p34 = scmp.ge.s32.totalorder %s33, 2
      %s35 = scalar_select %p34, 0, %s33
      %s36 = ssub.s32 %s23, %s35
      %p37 = scmp.eq.s32.totalorder %s36, 0
      %s39 = sadd.s32 %s38, 1
      %s40 = scalar_select %p37, %s38, %s39
      %p43 = pneg %p37
      %p44 = scmp.eq.s32.totalorder %s16, 3
      %p45 = por %p43, %p44
      %p46 = scmp.ne.s32.totalorder %s38, %s41
      %p47 = scmp.eq.s32.totalorder %s16, 0
      %p48 = por %p46, %p47
      %p49 = scmp.ne.s32.totalorder %s38, %s41
      %p50 = scmp.eq.s32.totalorder %s21, 3
      %p51 = por %p49, %p50
      %p52 = scmp.ne.s32.totalorder %s41, %s42
      %p53 = scmp.eq.s32.totalorder %s21, 0
      %p54 = por %p52, %p53
      %p55 = scmp.ne.s32.totalorder %s41, %s42
      %p56 = scmp.eq.s32.totalorder %s22, 3
      %p57 = por %p55, %p56
      %p59 = scmp.ne.s32.totalorder %s42, %s58
      %p60 = scmp.eq.s32.totalorder %s22, 0
      %p61 = por %p59, %p60
      %s62 = ssub.s32 %s23, %s35
      %p63 = scmp.eq.s32.totalorder %s62, 0
      %s65 = sadd.s32 %s64, 1
      %s66 = scalar_select %p63, %s64, %s65
      %p69 = pneg %p63
      %p70 = scmp.eq.s32.totalorder %s16, 3
      %p71 = por %p69, %p70
      %p72 = scmp.ne.s32.totalorder %s64, %s67
      %p73 = scmp.eq.s32.totalorder %s16, 0
      %p74 = por %p72, %p73
      %p75 = scmp.ne.s32.totalorder %s64, %s67
      %p76 = scmp.eq.s32.totalorder %s21, 3
      %p77 = por %p75, %p76
      %p78 = scmp.ne.s32.totalorder %s67, %s68
      %p79 = scmp.eq.s32.totalorder %s21, 0
      %p80 = por %p78, %p79
      %p81 = scmp.ne.s32.totalorder %s67, %s68
      %p82 = scmp.eq.s32.totalorder %s22, 3
      %p83 = por %p81, %p82
      %p85 = scmp.ne.s32.totalorder %s68, %s84
      %p86 = scmp.eq.s32.totalorder %s22, 0
      %p87 = por %p85, %p86
      %s88 = ssub.s32 %s24, %s31
      %p89 = scmp.eq.s32.totalorder %s88, 0
      %s91 = sadd.s32 %s90, 1
      %s92 = scalar_select %p89, %s90, %s91
      %p95 = pneg %p89
      %p96 = scmp.eq.s32.totalorder %s16, 3
      %p97 = por %p95, %p96
      %p98 = scmp.ne.s32.totalorder %s90, %s93
      %p99 = scmp.eq.s32.totalorder %s16, 0
      %p100 = por %p98, %p99
      %p101 = scmp.ne.s32.totalorder %s90, %s93
      %p102 = scmp.eq.s32.totalorder %s21, 3
      %p103 = por %p101, %p102
      %p104 = scmp.ne.s32.totalorder %s93, %s94
      %p105 = scmp.eq.s32.totalorder %s21, 0
      %p106 = por %p104, %p105
      %p107 = scmp.ne.s32.totalorder %s93, %s94
      %p108 = scmp.eq.s32.totalorder %s22, 3
      %p109 = por %p107, %p108
      %p111 = scmp.ne.s32.totalorder %s94, %s110
      %p112 = scmp.eq.s32.totalorder %s22, 0
      %p113 = por %p111, %p112
      %s114 = ssub.s32 %s24, %s31
      %p115 = scmp.eq.s32.totalorder %s114, 0
      %s117 = sadd.s32 %s116, 1
      %s118 = scalar_select %p115, %s116, %s117
      %p121 = pneg %p115
      %p122 = scmp.eq.s32.totalorder %s16, 3
      %p123 = por %p121, %p122
      %p124 = scmp.ne.s32.totalorder %s116, %s119
      %p125 = scmp.eq.s32.totalorder %s16, 0
      %p126 = por %p124, %p125
      %p127 = scmp.ne.s32.totalorder %s116, %s119
      %p128 = scmp.eq.s32.totalorder %s21, 3
      %p129 = por %p127, %p128
      %p130 = scmp.ne.s32.totalorder %s119, %s120
      %p131 = scmp.eq.s32.totalorder %s21, 0
      %p132 = por %p130, %p131
      %p133 = scmp.ne.s32.totalorder %s119, %s120
      %p134 = scmp.eq.s32.totalorder %s22, 3
      %p135 = por %p133, %p134
      %p137 = scmp.ne.s32.totalorder %s120, %s136
      %p138 = scmp.eq.s32.totalorder %s22, 0
      %p139 = por %p137, %p138
      %s140 = ssub.s32 %s24, %s31
      %p141 = scmp.eq.s32.totalorder %s140, 0
      %s143 = sadd.s32 %s142, 1
      %s144 = scalar_select %p141, %s142, %s143
      %p147 = pneg %p141
      %p148 = scmp.eq.s32.totalorder %s16, 3
      %p149 = por %p147, %p148
      %p150 = scmp.ne.s32.totalorder %s142, %s145
      %p151 = scmp.eq.s32.totalorder %s16, 0
      %p152 = por %p150, %p151
      %p153 = scmp.ne.s32.totalorder %s142, %s145
      %p154 = scmp.eq.s32.totalorder %s21, 3
      %p155 = por %p153, %p154
      %p156 = scmp.ne.s32.totalorder %s145, %s146
      %p157 = scmp.eq.s32.totalorder %s21, 0
      %p158 = por %p156, %p157
      %p159 = scmp.ne.s32.totalorder %s145, %s146
      %p160 = scmp.eq.s32.totalorder %s22, 3
      %p161 = por %p159, %p160
      %p163 = scmp.ne.s32.totalorder %s146, %s162
      %p164 = scmp.eq.s32.totalorder %s22, 0
      %p165 = por %p163, %p164
      %s166 = ssub.s32 %s24, %s31
      %p167 = scmp.eq.s32.totalorder %s166, 0
      %s169 = sadd.s32 %s168, 1
      %s170 = scalar_select %p167, %s168, %s169
      %p173 = pneg %p167
      %p174 = scmp.eq.s32.totalorder %s16, 3
      %p175 = por %p173, %p174
      %p176 = scmp.ne.s32.totalorder %s168, %s171
      %p177 = scmp.eq.s32.totalorder %s16, 0
      %p178 = por %p176, %p177
      %p179 = scmp.ne.s32.totalorder %s168, %s171
      %p180 = scmp.eq.s32.totalorder %s21, 3
      %p181 = por %p179, %p180
      %p182 = scmp.ne.s32.totalorder %s171, %s172
      %p183 = scmp.eq.s32.totalorder %s21, 0
      %p184 = por %p182, %p183
      %p185 = scmp.ne.s32.totalorder %s171, %s172
      %p186 = scmp.eq.s32.totalorder %s22, 3
      %p187 = por %p185, %p186
      %p189 = scmp.ne.s32.totalorder %s172, %s188
      %p190 = scmp.eq.s32.totalorder %s22, 0
      %p191 = por %p189, %p190
      %s192 = ssub.s32 %s24, %s31
      %p193 = scmp.eq.s32.totalorder %s192, 0
      %s195 = sadd.s32 %s194, 1
      %s196 = scalar_select %p193, %s194, %s195
      %p199 = pneg %p193
      %p200 = scmp.eq.s32.totalorder %s16, 3
      %p201 = por %p199, %p200
      %p202 = scmp.ne.s32.totalorder %s194, %s197
      %p203 = scmp.eq.s32.totalorder %s16, 0
      %p204 = por %p202, %p203
      %p205 = scmp.ne.s32.totalorder %s194, %s197
      %p206 = scmp.eq.s32.totalorder %s21, 3
      %p207 = por %p205, %p206
      %p208 = scmp.ne.s32.totalorder %s197, %s198
      %p209 = scmp.eq.s32.totalorder %s21, 0
      %p210 = por %p208, %p209
      %p211 = scmp.ne.s32.totalorder %s197, %s198
      %p212 = scmp.eq.s32.totalorder %s22, 3
      %p213 = por %p211, %p212
      %p215 = scmp.ne.s32.totalorder %s198, %s214
      %p216 = scmp.eq.s32.totalorder %s22, 0
      %p217 = por %p215, %p216
      %s218 = ssub.s32 %s23, %s35
      %p219 = scmp.eq.s32.totalorder %s218, 0
      %s221 = sadd.s32 %s220, 1
      %s222 = scalar_select %p219, %s220, %s221
      %p225 = pneg %p219
      %p226 = scmp.eq.s32.totalorder %s16, 3
      %p227 = por %p225, %p226
      %p228 = scmp.ne.s32.totalorder %s220, %s223
      %p229 = scmp.eq.s32.totalorder %s16, 0
      %p230 = por %p228, %p229
      %p231 = scmp.ne.s32.totalorder %s220, %s223
      %p232 = scmp.eq.s32.totalorder %s21, 3
      %p233 = por %p231, %p232
      %p234 = scmp.ne.s32.totalorder %s223, %s224
      %p235 = scmp.eq.s32.totalorder %s21, 0
      %p236 = por %p234, %p235
      %p237 = scmp.ne.s32.totalorder %s223, %s224
      %p238 = scmp.eq.s32.totalorder %s22, 3
      %p239 = por %p237, %p238
      %p241 = scmp.ne.s32.totalorder %s224, %s240
      %p242 = scmp.eq.s32.totalorder %s22, 0
      %p243 = por %p241, %p242
      %p244 = scmp.le.s32.totalorder 1, %s16
      %p245 = scmp.lt.s32.totalorder %s16, 5
      %p246 = pnand %p244, %p245
      %p247 = pneg %p246
      // Predicated region
      $region9: #{roberta_forward.1} parent=5 // pred_check
        _
      $region10: #{roberta_forward.1} parent=5 // pred_check_branch
        %249 = sbr.rel (%p246) target = $region12
      $region11: #{roberta_forward.1} parent=5 // pred_region
        %s250 = ssub.s32 %s16, 1
      $region12: #{roberta_forward.1} parent=5 // pred_fallthru
        _
      %p251 = scmp.lt.s32.totalorder %s16, 4
      // Predicated region
      $region13: #{roberta_forward.1} parent=5 // pred_check
        %p252 = pneg %p251
      $region14: #{roberta_forward.1} parent=5 // pred_check_branch
        %254 = sbr.rel (%p252) target = $region16
      $region15: #{roberta_forward.1} parent=5 // pred_region
        // Predicated region
        $region17: #{roberta_forward.1} parent=15 // pred_check
          %p255 = pneg %p48
        $region18: #{roberta_forward.1} parent=15 // pred_check_branch
          %257 = sbr.rel (%p255) target = $region20
        $region19: #{roberta_forward.1} parent=15 // pred_region
          %p258 = scmp.lt.s32.totalorder %s23, 1
          %s259 = scalar_select %p258, %s23, 1
          %s260 = smul.addr %s259, 8
          %s261 = scalar_lea.vmem %s0, %s260
        $region20: #{roberta_forward.1} parent=15 // pred_fallthru
          _
        // Predicated region
        $region21: #{roberta_forward.1} parent=15 // pred_check
          %p262 = pneg %p74
        $region22: #{roberta_forward.1} parent=15 // pred_check_branch
          %264 = sbr.rel (%p262) target = $region24
        $region23: #{roberta_forward.1} parent=15 // pred_region
          %p265 = scmp.lt.s32.totalorder %s23, 1
          %s266 = scalar_select %p265, %s23, 1
          %s267 = scalar_lea.vmem %s1, %s266
        $region24: #{roberta_forward.1} parent=15 // pred_fallthru
          _
        // Predicated region
        $region25: #{roberta_forward.1} parent=15 // pred_check
          %p268 = pneg %p100
        $region26: #{roberta_forward.1} parent=15 // pred_check_branch
          %270 = sbr.rel (%p268) target = $region28
        $region27: #{roberta_forward.1} parent=15 // pred_region
          %p271 = scmp.lt.s32.totalorder %s24, 1
          %s272 = scalar_select %p271, %s24, 1
          %s273 = smul.addr %s272, 48
          %s274 = smul.addr %s273, 4
          %s275 = scalar_lea.vmem %s2, %s274
        $region28: #{roberta_forward.1} parent=15 // pred_fallthru
          _
        // Predicated region
        $region29: #{roberta_forward.1} parent=15 // pred_check
          %p276 = pneg %p126
        $region30: #{roberta_forward.1} parent=15 // pred_check_branch
          %278 = sbr.rel (%p276) target = $region32
        $region31: #{roberta_forward.1} parent=15 // pred_region
          %p279 = scmp.lt.s32.totalorder %s24, 1
          %s280 = scalar_select %p279, %s24, 1
          %s281 = smul.addr %s280, 4
          %s282 = smul.addr %s281, 4
          %s283 = scalar_lea.vmem %s3, %s282
        $region32: #{roberta_forward.1} parent=15 // pred_fallthru
          _
        // Predicated region
        $region33: #{roberta_forward.1} parent=15 // pred_check
          %p284 = pneg %p152
        $region34: #{roberta_forward.1} parent=15 // pred_check_branch
          %286 = sbr.rel (%p284) target = $region36
        $region35: #{roberta_forward.1} parent=15 // pred_region
          %p287 = scmp.lt.s32.totalorder %s24, 1
          %s288 = scalar_select %p287, %s24, 1
          %s289 = smul.addr %s288, 4
          %s290 = smul.addr %s289, 4
          %s291 = scalar_lea.vmem %s4, %s290
        $region36: #{roberta_forward.1} parent=15 // pred_fallthru
          _
        // Predicated region
        $region37: #{roberta_forward.1} parent=15 // pred_check
          %p292 = pneg %p178
        $region38: #{roberta_forward.1} parent=15 // pred_check_branch
          %294 = sbr.rel (%p292) target = $region40
        $region39: #{roberta_forward.1} parent=15 // pred_region
          %p295 = scmp.lt.s32.totalorder %s24, 1
          %s296 = scalar_select %p295, %s24, 1
          %s297 = smul.addr %s296, 8
          %s298 = smul.addr %s297, 4
          %s299 = scalar_lea.vmem %s5, %s298
        $region40: #{roberta_forward.1} parent=15 // pred_fallthru
          _
        // Predicated region
        $region41: #{roberta_forward.1} parent=15 // pred_check
          %p300 = pneg %p204
        $region42: #{roberta_forward.1} parent=15 // pred_check_branch
          %302 = sbr.rel (%p300) target = $region44
        $region43: #{roberta_forward.1} parent=15 // pred_region
          %p303 = scmp.lt.s32.totalorder %s24, 1
          %s304 = scalar_select %p303, %s24, 1
          %s305 = smul.addr %s304, 3
          %s306 = smul.addr %s305, 8
          %s307 = scalar_lea.vmem %s6, %s306
        $region44: #{roberta_forward.1} parent=15 // pred_fallthru
          _
      $region16: #{roberta_forward.1} parent=5 // pred_fallthru
        _
      %p308 = scmp.le.s32.totalorder 1, %s16
      %p309 = scmp.lt.s32.totalorder %s16, 5
      %p310 = pnand %p308, %p309
      %p311 = pneg %p310
      // Predicated region
      $region45: #{roberta_forward.1} parent=5 // pred_check
        _
      $region46: #{roberta_forward.1} parent=5 // pred_check_branch
        %313 = sbr.rel (%p310) target = $region48
      $region47: #{roberta_forward.1} parent=5 // pred_region
        %s314 = ssub.s32 %s16, 1
        %p315 = scmp.lt.s32.totalorder %s25, 1
        %s316 = scalar_select %p315, %s25, 1
        %s317 = smul.addr %s316, 8
        %s318 = scalar_lea.vmem %s0, %s317
        %p319 = pneg %p54
        %p320 = pneg %p51
        %p321 = scmp.lt.s32.totalorder %s25, 1
        %s322 = scalar_select %p321, %s25, 1
        %s323 = scalar_lea.vmem %s1, %s322
        %p324 = pneg %p80
        %p325 = pneg %p77
        %p326 = scmp.lt.s32.totalorder %s26, 1
        %s327 = scalar_select %p326, %s26, 1
        %s328 = smul.addr %s327, 48
        %s329 = smul.addr %s328, 4
        %s330 = scalar_lea.vmem %s2, %s329
        %p331 = pneg %p106
        %p332 = pneg %p103
        %p333 = scmp.lt.s32.totalorder %s26, 1
        %s334 = scalar_select %p333, %s26, 1
        %s335 = smul.addr %s334, 4
        %s336 = smul.addr %s335, 4
        %s337 = scalar_lea.vmem %s3, %s336
        %p338 = pneg %p132
        %p339 = pneg %p129
        %p340 = scmp.lt.s32.totalorder %s26, 1
        %s341 = scalar_select %p340, %s26, 1
        %s342 = smul.addr %s341, 4
        %s343 = smul.addr %s342, 4
        %s344 = scalar_lea.vmem %s4, %s343
        %p345 = pneg %p158
        %p346 = pneg %p155
        %p347 = scmp.lt.s32.totalorder %s26, 1
        %s348 = scalar_select %p347, %s26, 1
        %s349 = smul.addr %s348, 8
        %s350 = smul.addr %s349, 4
        %s351 = scalar_lea.vmem %s5, %s350
        %p352 = pneg %p184
        %p353 = pneg %p181
        %p354 = scmp.lt.s32.totalorder %s26, 1
        %s355 = scalar_select %p354, %s26, 1
        %s356 = smul.addr %s355, 3
        %s357 = smul.addr %s356, 8
        %s358 = scalar_lea.vmem %s6, %s357
        %p359 = pneg %p210
        %p360 = pneg %p207
        %p361 = pneg %p236
        %p362 = pneg %p233
        %s363 = sand.u32 %s223, 1
        %s364 = scalar_lea.sflag [#allocation4], %s363
        %s365 = sand.u32 %s223, 1
        %s366 = scalar_lea.vmem [#allocation3], %s365
        %p367 = scmp.lt.s32.totalorder %s25, 1
        %s368 = scalar_select %p367, %s25, 1
        %s369 = smul.addr %s368, 8
        %s370 = scalar_lea.vmem %s0, %s369
        %p371 = scmp.lt.s32.totalorder %s25, 1
        %s372 = scalar_select %p371, %s25, 1
        %s373 = scalar_lea.vmem %s1, %s372
        %p374 = scmp.lt.s32.totalorder %s26, 1
        %s375 = scalar_select %p374, %s26, 1
        %s376 = smul.addr %s375, 48
        %s377 = smul.addr %s376, 4
        %s378 = scalar_lea.vmem %s2, %s377
        %p379 = scmp.lt.s32.totalorder %s26, 1
        %s380 = scalar_select %p379, %s26, 1
        %s381 = smul.addr %s380, 4
        %s382 = smul.addr %s381, 4
        %s383 = scalar_lea.vmem %s3, %s382
        %p384 = scmp.lt.s32.totalorder %s26, 1
        %s385 = scalar_select %p384, %s26, 1
        %s386 = smul.addr %s385, 4
        %s387 = smul.addr %s386, 4
        %s388 = scalar_lea.vmem %s4, %s387
        %p389 = scmp.lt.s32.totalorder %s26, 1
        %s390 = scalar_select %p389, %s26, 1
        %s391 = smul.addr %s390, 8
        %s392 = smul.addr %s391, 4
        %s393 = scalar_lea.vmem %s5, %s392
        %p394 = scmp.lt.s32.totalorder %s26, 1
        %s395 = scalar_select %p394, %s26, 1
        %s396 = smul.addr %s395, 3
        %s397 = smul.addr %s396, 8
        %s398 = scalar_lea.vmem %s6, %s397
        %v400 = vld [vmem:[%s398] sm:$0xff]
        %v401 = vld [vmem:[%s398 + $0x8] sm:$0xff]
        %v402 = vld [vmem:[%s398 + $0x10] sm:$0xff]
        %p403 = scmp.eq.s32.totalorder %s26, 0
        // Predicated region
        $region49: #{roberta_forward.1} parent=47 // pred_check
          %p404 = pneg %p403
        $region50: #{roberta_forward.1} parent=47 // pred_check_branch
          %406 = sbr.rel (%p404) target = $region52
        $region51: #{roberta_forward.1} parent=47 // pred_region
          %v407 = vld [vmem:[%s370] sm:$0xff]
          %vm408 = vcmask 261120
          %v409 = vsel %vm408, %v407, 0.0
          %410 = vadd.xlane.f32.xlu0 %v409
          %v411 = vpop.xlane.xlu0 %410
          %v412 = vrcp.pop 32.0
          %v413 = vmul.f32 %v411, %v412
          %v414 = vsub.f32 %v407, %v413
          %v415 = vmul.f32 %v414, %v414
          %v416 = vsel %vm408, %v415, 0.0
          %417 = vadd.xlane.f32.xlu0 %v416
          %v418 = vpop.xlane.xlu0 %417
          %v419 = vmul.f32 %v418, %v412
          %v420 = vadd.f32 %v419, 1e-05
          %v421 = vrsqrt.pop %v420
          %v422 = vmul.f32 %v414, %v421
          %v423 = vlaneseq
          %v424 = vshrl.u32 %v423, 7
          %v425 = vsub.s32 3, %v424
          %v426 = vrot.slane %v402, %v425
          %v427 = vmul.f32 %v422, %v426
          %v428 = vlaneseq
          %v429 = vshrl.u32 %v428, 7
          %v430 = vsub.s32 4, %v429
          %v431 = vrot.slane %v402, %v430
          %v432 = vadd.f32 %v427, %v431
          %433 = vst.msk [vmem:[#allocation2] sm:$0xff] %vm408, %v432
        $region52: #{roberta_forward.1} parent=47 // pred_fallthru
          _
        %v434 = vld [vmem:[#allocation2] sm:$0xff]
        %v435 = vpack.c.bf16 %v434, %v434
        %v436 = vld [vmem:[%s378] sm:$0xf]
        %v437 = vld [vmem:[%s378 + $0x4] sm:$0xf]
        %v438 = vld [vmem:[%s378 + $0x8] sm:$0xf]
        %v439 = vld [vmem:[%s378 + $0xc] sm:$0xf]
        %v440 = vld [vmem:[%s378 + $0x10] sm:$0xf]
        %v441 = vld [vmem:[%s378 + $0x14] sm:$0xf]
        %v442 = vld [vmem:[%s378 + $0x18] sm:$0xf]
        %v443 = vld [vmem:[%s378 + $0x1c] sm:$0xf]
        %v444 = vld [vmem:[%s378 + $0x20] sm:$0xf]
        %v445 = vld [vmem:[%s378 + $0x24] sm:$0xf]
        %v446 = vld [vmem:[%s378 + $0x28] sm:$0xf]
        %v447 = vld [vmem:[%s378 + $0x2c] sm:$0xf]
        %v448 = vld [vmem:[%s378 + $0x30] sm:$0xf]
        %v449 = vld [vmem:[%s378 + $0x34] sm:$0xf]
        %v450 = vld [vmem:[%s378 + $0x38] sm:$0xf]
        %v451 = vld [vmem:[%s378 + $0x3c] sm:$0xf]
        %v452 = vld [vmem:[%s378 + $0x40] sm:$0xf]
        %v453 = vld [vmem:[%s378 + $0x44] sm:$0xf]
        %v454 = vld [vmem:[%s378 + $0x48] sm:$0xf]
        %v455 = vld [vmem:[%s378 + $0x4c] sm:$0xf]
        %v456 = vld [vmem:[%s378 + $0x50] sm:$0xf]
        %v457 = vld [vmem:[%s378 + $0x54] sm:$0xf]
        %v458 = vld [vmem:[%s378 + $0x58] sm:$0xf]
        %v459 = vld [vmem:[%s378 + $0x5c] sm:$0xf]
        %v460 = vld [vmem:[%s378 + $0x60] sm:$0xf]
        %v461 = vld [vmem:[%s378 + $0x64] sm:$0xf]
        %v462 = vld [vmem:[%s378 + $0x68] sm:$0xf]
        %v463 = vld [vmem:[%s378 + $0x6c] sm:$0xf]
        %v464 = vld [vmem:[%s378 + $0x70] sm:$0xf]
        %v465 = vld [vmem:[%s378 + $0x74] sm:$0xf]
        %v466 = vld [vmem:[%s378 + $0x78] sm:$0xf]
        %v467 = vld [vmem:[%s378 + $0x7c] sm:$0xf]
        %v468 = vld [vmem:[%s378 + $0x80] sm:$0xf]
        %v469 = vld [vmem:[%s378 + $0x84] sm:$0xf]
        %v470 = vld [vmem:[%s378 + $0x88] sm:$0xf]
        %v471 = vld [vmem:[%s378 + $0x8c] sm:$0xf]
        %v472 = vld [vmem:[%s378 + $0x90] sm:$0xf]
        %v473 = vld [vmem:[%s378 + $0x94] sm:$0xf]
        %v474 = vld [vmem:[%s378 + $0x98] sm:$0xf]
        %v475 = vld [vmem:[%s378 + $0x9c] sm:$0xf]
        %v476 = vld [vmem:[%s378 + $0xa0] sm:$0xf]
        %v477 = vld [vmem:[%s378 + $0xa4] sm:$0xf]
        %v478 = vld [vmem:[%s378 + $0xa8] sm:$0xf]
        %v479 = vld [vmem:[%s378 + $0xac] sm:$0xf]
        %v480 = vld [vmem:[%s378 + $0xb0] sm:$0xf]
        %v481 = vld [vmem:[%s378 + $0xb4] sm:$0xf]
        %v482 = vld [vmem:[%s378 + $0xb8] sm:$0xf]
        %v483 = vld [vmem:[%s378 + $0xbc] sm:$0xf]
        %v486 = vcombine.high %v400, %v400
        %v488 = vunpack.c.l.s4 1966171168
        %v489 = vunpack.c.0.s8 %v488
        %v490 = vlaneseq
        %v491 = vshrl.u32 %v490, 7
        %v492 = vsub.s32 %v489, %v491
        %v493 = vrot.slane %v400, %v492
        %v495 = vunpack.c.l.s4 1966171168
        %v496 = vunpack.c.0.s8 %v495
        %v497 = vlaneseq
        %v498 = vshrl.u32 %v497, 7
        %v499 = vsub.s32 %v496, %v498
        %v500 = vrot.slane %v486, %v499
        %v501 = vcombine.high %v493, %v493
        %v502 = vcombine.high %v500, %v500
        %v504 = vunpack.c.l.s4 1966171168
        %v505 = vunpack.c.0.s8 %v504
        %v506 = vlaneseq
        %v507 = vshrl.u32 %v506, 7
        %v508 = vsub.s32 %v505, %v507
        %v509 = vrot.slane %v493, %v508
        %v511 = vunpack.c.l.s4 1966171168
        %v512 = vunpack.c.0.s8 %v511
        %v513 = vlaneseq
        %v514 = vshrl.u32 %v513, 7
        %v515 = vsub.s32 %v512, %v514
        %v516 = vrot.slane %v500, %v515
        %v518 = vunpack.c.l.s4 1966171168
        %v519 = vunpack.c.0.s8 %v518
        %v520 = vlaneseq
        %v521 = vshrl.u32 %v520, 7
        %v522 = vsub.s32 %v519, %v521
        %v523 = vrot.slane %v501, %v522
        %v525 = vunpack.c.l.s4 1966171168
        %v526 = vunpack.c.0.s8 %v525
        %v527 = vlaneseq
        %v528 = vshrl.u32 %v527, 7
        %v529 = vsub.s32 %v526, %v528
        %v530 = vrot.slane %v502, %v529
        %v531 = vcombine.high %v509, %v509
        %v532 = vcombine.high %v516, %v516
        %v533 = vcombine.high %v523, %v523
        %v534 = vcombine.high %v530, %v530
        %v536 = vunpack.c.l.s4 1966171168
        %v537 = vunpack.c.0.s8 %v536
        %v538 = vlaneseq
        %v539 = vshrl.u32 %v538, 7
        %v540 = vsub.s32 %v537, %v539
        %v541 = vrot.slane %v401, %v540
        %v542 = vcombine.high %v541, %v541
        %v544 = vunpack.c.l.s4 1966171168
        %v545 = vunpack.c.0.s8 %v544
        %v546 = vlaneseq
        %v547 = vshrl.u32 %v546, 7
        %v548 = vsub.s32 %v545, %v547
        %v549 = vrot.slane %v541, %v548
        %v551 = vunpack.c.l.s4 1966171168
        %v552 = vunpack.c.0.s8 %v551
        %v553 = vlaneseq
        %v554 = vshrl.u32 %v553, 7
        %v555 = vsub.s32 %v552, %v554
        %v556 = vrot.slane %v542, %v555
        %v557 = vcombine.high %v549, %v549
        %v558 = vcombine.high %v556, %v556
        %v559 = vlaneseq
        %v560 = vshrl.u32 %v559, 7
        %v561 = vsub.s32 0, %v560
        %v562 = vrot.slane %v509, %v561
        %v563 = vlaneseq
        %v564 = vshrl.u32 %v563, 7
        %v565 = vsub.s32 0, %v564
        %v566 = vrot.slane %v523, %v565
        %v567 = vlaneseq
        %v568 = vshrl.u32 %v567, 7
        %v569 = vsub.s32 0, %v568
        %v570 = vrot.slane %v531, %v569
        %v571 = vlaneseq
        %v572 = vshrl.u32 %v571, 7
        %v573 = vsub.s32 0, %v572
        %v574 = vrot.slane %v533, %v573
        %v575 = vlaneseq
        %v576 = vshrl.u32 %v575, 7
        %v577 = vsub.s32 0, %v576
        %v578 = vrot.slane %v516, %v577
        %v579 = vlaneseq
        %v580 = vshrl.u32 %v579, 7
        %v581 = vsub.s32 0, %v580
        %v582 = vrot.slane %v530, %v581
        %v583 = vlaneseq
        %v584 = vshrl.u32 %v583, 7
        %v585 = vsub.s32 0, %v584
        %v586 = vrot.slane %v532, %v585
        %v587 = vlaneseq
        %v588 = vshrl.u32 %v587, 7
        %v589 = vsub.s32 0, %v588
        %v590 = vrot.slane %v534, %v589
        %v591 = vlaneseq
        %v592 = vshrl.u32 %v591, 7
        %v593 = vsub.s32 0, %v592
        %v594 = vrot.slane %v549, %v593
        %v595 = vlaneseq
        %v596 = vshrl.u32 %v595, 7
        %v597 = vsub.s32 0, %v596
        %v598 = vrot.slane %v556, %v597
        %v599 = vlaneseq
        %v600 = vshrl.u32 %v599, 7
        %v601 = vsub.s32 0, %v600
        %v602 = vrot.slane %v557, %v601
        %v603 = vlaneseq
        %v604 = vshrl.u32 %v603, 7
        %v605 = vsub.s32 0, %v604
        %v606 = vrot.slane %v558, %v605
        %v623 = vunpack.c.l.b16 %v436
        %v624 = vunpack.c.l.b16 %v437
        %v625 = vunpack.c.l.b16 %v438
        %v626 = vunpack.c.l.b16 %v439
        %v627 = vpack.c.b16 %v624, %v623
        %v628 = vpack.c.b16 %v626, %v625
        %vm631 = vcmask 261120
        %v633 = vsel %vm631, %v435, 0
        %635 = vmatprep.subr.bf16.mxu0 0
        %636 = vmatpush1.bf16.msra.mxu0 %v627
        %637 = vmatprep.subr.bf16.mxu0 0
        %638 = vmatpush1.bf16.msra.mxu0 %v628
        %639 = vmatprep.subr.bf16.mxu0 0
        %640 = vmatpush1.bf16.msra.mxu0 0
        %641 = vmatprep.subr.bf16.mxu0 0
        %642 = vmatpush1.bf16.msra.mxu0 0
        %643 = vmatprep.subr.bf16.mxu0 0
        %644 = vmatpush1.bf16.msra.mxu0 0
        %645 = vmatprep.subr.bf16.mxu0 0
        %646 = vmatpush1.bf16.msra.mxu0 0
        %647 = vmatprep.subr.bf16.mxu0 0
        %648 = vmatpush1.bf16.msra.mxu0 0
        %649 = vmatprep.subr.bf16.mxu0 0
        %650 = vmatpush1.bf16.msra.mxu0 0
        %651 = vmatprep.subr.bf16.mxu0 0
        %652 = vmatpush1.bf16.msra.mxu0 0
        %653 = vmatprep.subr.bf16.mxu0 0
        %654 = vmatpush1.bf16.msra.mxu0 0
        %655 = vmatprep.subr.bf16.mxu0 0
        %656 = vmatpush1.bf16.msra.mxu0 0
        %657 = vmatprep.subr.bf16.mxu0 0
        %658 = vmatpush1.bf16.msra.mxu0 0
        %659 = vmatprep.subr.bf16.mxu0 0
        %660 = vmatpush1.bf16.msra.mxu0 0
        %661 = vmatprep.subr.bf16.mxu0 0
        %662 = vmatpush1.bf16.msra.mxu0 0
        %663 = vmatprep.subr.bf16.mxu0 0
        %664 = vmatpush1.bf16.msra.mxu0 0
        %665 = vmatprep.subr.bf16.mxu0 0
        %666 = vmatpush1.bf16.msra.mxu0 0
        %667 = vmatprep.mubr.bf16.mxu0 0
        %668 = vmatmul.mubr.bf16.gmra.mrb[0].mxu0 %v633
        %v669 = vpop.f32.mrb[0].mxu0
        %v670 = vadd.f32 %v562, %v669
        %v671 = vpop.f32.mrb[0].mxu0
        %v672 = vpop.f32.mrb[0].mxu0
        %v673 = vpop.f32.mrb[0].mxu0
        %674 = vdwg.mxu0
        %v679 = vunpack.c.l.b16 %v440
        %v680 = vunpack.c.l.b16 %v441
        %v681 = vunpack.c.l.b16 %v442
        %v682 = vunpack.c.l.b16 %v443
        %v683 = vpack.c.b16 %v680, %v679
        %v684 = vpack.c.b16 %v682, %v681
        %687 = vmatprep.subr.bf16.mxu0 0
        %688 = vmatpush1.bf16.msra.mxu0 %v683
        %689 = vmatprep.subr.bf16.mxu0 0
        %690 = vmatpush1.bf16.msra.mxu0 %v684
        %691 = vmatprep.subr.bf16.mxu0 0
        %692 = vmatpush1.bf16.msra.mxu0 0
        %693 = vmatprep.subr.bf16.mxu0 0
        %694 = vmatpush1.bf16.msra.mxu0 0
        %695 = vmatprep.subr.bf16.mxu0 0
        %696 = vmatpush1.bf16.msra.mxu0 0
        %697 = vmatprep.subr.bf16.mxu0 0
        %698 = vmatpush1.bf16.msra.mxu0 0
        %699 = vmatprep.subr.bf16.mxu0 0
        %700 = vmatpush1.bf16.msra.mxu0 0
        %701 = vmatprep.subr.bf16.mxu0 0
        %702 = vmatpush1.bf16.msra.mxu0 0
        %703 = vmatprep.subr.bf16.mxu0 0
        %704 = vmatpush1.bf16.msra.mxu0 0
        %705 = vmatprep.subr.bf16.mxu0 0
        %706 = vmatpush1.bf16.msra.mxu0 0
        %707 = vmatprep.subr.bf16.mxu0 0
        %708 = vmatpush1.bf16.msra.mxu0 0
        %709 = vmatprep.subr.bf16.mxu0 0
        %710 = vmatpush1.bf16.msra.mxu0 0
        %711 = vmatprep.subr.bf16.mxu0 0
        %712 = vmatpush1.bf16.msra.mxu0 0
        %713 = vmatprep.subr.bf16.mxu0 0
        %714 = vmatpush1.bf16.msra.mxu0 0
        %715 = vmatprep.subr.bf16.mxu0 0
        %716 = vmatpush1.bf16.msra.mxu0 0
        %717 = vmatprep.subr.bf16.mxu0 0
        %718 = vmatpush1.bf16.msra.mxu0 0
        %719 = vmatprep.mubr.bf16.mxu0 0
        %720 = vmatmul.mubr.bf16.gmra.mrb[0].mxu0 %v633
        %v721 = vpop.f32.mrb[0].mxu0
        %v722 = vadd.f32 %v566, %v721
        %v723 = vpop.f32.mrb[0].mxu0
        %v724 = vpop.f32.mrb[0].mxu0
        %v725 = vpop.f32.mrb[0].mxu0
        %726 = vdwg.mxu0
        %v731 = vunpack.c.l.b16 %v444
        %v732 = vunpack.c.l.b16 %v445
        %v733 = vunpack.c.l.b16 %v446
        %v734 = vunpack.c.l.b16 %v447
        %v735 = vpack.c.b16 %v732, %v731
        %v736 = vpack.c.b16 %v734, %v733
        %739 = vmatprep.subr.bf16.mxu0 0
        %740 = vmatpush1.bf16.msra.mxu0 %v735
        %741 = vmatprep.subr.bf16.mxu0 0
        %742 = vmatpush1.bf16.msra.mxu0 %v736
        %743 = vmatprep.subr.bf16.mxu0 0
        %744 = vmatpush1.bf16.msra.mxu0 0
        %745 = vmatprep.subr.bf16.mxu0 0
        %746 = vmatpush1.bf16.msra.mxu0 0
        %747 = vmatprep.subr.bf16.mxu0 0
        %748 = vmatpush1.bf16.msra.mxu0 0
        %749 = vmatprep.subr.bf16.mxu0 0
        %750 = vmatpush1.bf16.msra.mxu0 0
        %751 = vmatprep.subr.bf16.mxu0 0
        %752 = vmatpush1.bf16.msra.mxu0 0
        %753 = vmatprep.subr.bf16.mxu0 0
        %754 = vmatpush1.bf16.msra.mxu0 0
        %755 = vmatprep.subr.bf16.mxu0 0
        %756 = vmatpush1.bf16.msra.mxu0 0
        %757 = vmatprep.subr.bf16.mxu0 0
        %758 = vmatpush1.bf16.msra.mxu0 0
        %759 = vmatprep.subr.bf16.mxu0 0
        %760 = vmatpush1.bf16.msra.mxu0 0
        %761 = vmatprep.subr.bf16.mxu0 0
        %762 = vmatpush1.bf16.msra.mxu0 0
        %763 = vmatprep.subr.bf16.mxu0 0
        %764 = vmatpush1.bf16.msra.mxu0 0
        %765 = vmatprep.subr.bf16.mxu0 0
        %766 = vmatpush1.bf16.msra.mxu0 0
        %767 = vmatprep.subr.bf16.mxu0 0
        %768 = vmatpush1.bf16.msra.mxu0 0
        %769 = vmatprep.subr.bf16.mxu0 0
        %770 = vmatpush1.bf16.msra.mxu0 0
        %771 = vmatprep.mubr.bf16.mxu0 0
        %772 = vmatmul.mubr.bf16.gmra.mrb[0].mxu0 %v633
        %v773 = vpop.f32.mrb[0].mxu0
        %v774 = vadd.f32 %v570, %v773
        %v775 = vpop.f32.mrb[0].mxu0
        %v776 = vpop.f32.mrb[0].mxu0
        %v777 = vpop.f32.mrb[0].mxu0
        %778 = vdwg.mxu0
        %v783 = vunpack.c.l.b16 %v448
        %v784 = vunpack.c.l.b16 %v449
        %v785 = vunpack.c.l.b16 %v450
        %v786 = vunpack.c.l.b16 %v451
        %v787 = vpack.c.b16 %v784, %v783
        %v788 = vpack.c.b16 %v786, %v785
        %791 = vmatprep.subr.bf16.mxu0 0
        %792 = vmatpush1.bf16.msra.mxu0 %v787
        %793 = vmatprep.subr.bf16.mxu0 0
        %794 = vmatpush1.bf16.msra.mxu0 %v788
        %795 = vmatprep.subr.bf16.mxu0 0
        %796 = vmatpush1.bf16.msra.mxu0 0
        %797 = vmatprep.subr.bf16.mxu0 0
        %798 = vmatpush1.bf16.msra.mxu0 0
        %799 = vmatprep.subr.bf16.mxu0 0
        %800 = vmatpush1.bf16.msra.mxu0 0
        %801 = vmatprep.subr.bf16.mxu0 0
        %802 = vmatpush1.bf16.msra.mxu0 0
        %803 = vmatprep.subr.bf16.mxu0 0
        %804 = vmatpush1.bf16.msra.mxu0 0
        %805 = vmatprep.subr.bf16.mxu0 0
        %806 = vmatpush1.bf16.msra.mxu0 0
        %807 = vmatprep.subr.bf16.mxu0 0
        %808 = vmatpush1.bf16.msra.mxu0 0
        %809 = vmatprep.subr.bf16.mxu0 0
        %810 = vmatpush1.bf16.msra.mxu0 0
        %811 = vmatprep.subr.bf16.mxu0 0
        %812 = vmatpush1.bf16.msra.mxu0 0
        %813 = vmatprep.subr.bf16.mxu0 0
        %814 = vmatpush1.bf16.msra.mxu0 0
        %815 = vmatprep.subr.bf16.mxu0 0
        %816 = vmatpush1.bf16.msra.mxu0 0
        %817 = vmatprep.subr.bf16.mxu0 0
        %818 = vmatpush1.bf16.msra.mxu0 0
        %819 = vmatprep.subr.bf16.mxu0 0
        %820 = vmatpush1.bf16.msra.mxu0 0
        %821 = vmatprep.subr.bf16.mxu0 0
        %822 = vmatpush1.bf16.msra.mxu0 0
        %823 = vmatprep.mubr.bf16.mxu0 0
        %824 = vmatmul.mubr.bf16.gmra.mrb[0].mxu0 %v633
        %v825 = vpop.f32.mrb[0].mxu0
        %v826 = vadd.f32 %v574, %v825
        %v827 = vpop.f32.mrb[0].mxu0
        %v828 = vpop.f32.mrb[0].mxu0
        %v829 = vpop.f32.mrb[0].mxu0
        %830 = vdwg.mxu0
        %v835 = vunpack.c.l.b16 %v452
        %v836 = vunpack.c.l.b16 %v453
        %v837 = vunpack.c.l.b16 %v454
        %v838 = vunpack.c.l.b16 %v455
        %v839 = vpack.c.b16 %v836, %v835
        %v840 = vpack.c.b16 %v838, %v837
        %843 = vmatprep.subr.bf16.mxu0 0
        %844 = vmatpush1.bf16.msra.mxu0 %v839
        %845 = vmatprep.subr.bf16.mxu0 0
        %846 = vmatpush1.bf16.msra.mxu0 %v840
        %847 = vmatprep.subr.bf16.mxu0 0
        %848 = vmatpush1.bf16.msra.mxu0 0
        %849 = vmatprep.subr.bf16.mxu0 0
        %850 = vmatpush1.bf16.msra.mxu0 0
        %851 = vmatprep.subr.bf16.mxu0 0
        %852 = vmatpush1.bf16.msra.mxu0 0
        %853 = vmatprep.subr.bf16.mxu0 0
        %854 = vmatpush1.bf16.msra.mxu0 0
        %855 = vmatprep.subr.bf16.mxu0 0
        %856 = vmatpush1.bf16.msra.mxu0 0
        %857 = vmatprep.subr.bf16.mxu0 0
        %858 = vmatpush1.bf16.msra.mxu0 0
        %859 = vmatprep.subr.bf16.mxu0 0
        %860 = vmatpush1.bf16.msra.mxu0 0
        %861 = vmatprep.subr.bf16.mxu0 0
        %862 = vmatpush1.bf16.msra.mxu0 0
        %863 = vmatprep.subr.bf16.mxu0 0
        %864 = vmatpush1.bf16.msra.mxu0 0
        %865 = vmatprep.subr.bf16.mxu0 0
        %866 = vmatpush1.bf16.msra.mxu0 0
        %867 = vmatprep.subr.bf16.mxu0 0
        %868 = vmatpush1.bf16.msra.mxu0 0
        %869 = vmatprep.subr.bf16.mxu0 0
        %870 = vmatpush1.bf16.msra.mxu0 0
        %871 = vmatprep.subr.bf16.mxu0 0
        %872 = vmatpush1.bf16.msra.mxu0 0
        %873 = vmatprep.subr.bf16.mxu0 0
        %874 = vmatpush1.bf16.msra.mxu0 0
        %875 = vmatprep.mubr.bf16.mxu0 0
        %876 = vmatmul.mubr.bf16.gmra.mrb[0].mxu0 %v633
        %v877 = vpop.f32.mrb[0].mxu0
        %v878 = vadd.f32 %v578, %v877
        %v879 = vpop.f32.mrb[0].mxu0
        %v880 = vpop.f32.mrb[0].mxu0
        %v881 = vpop.f32.mrb[0].mxu0
        %882 = vdwg.mxu0
        %v887 = vunpack.c.l.b16 %v456
        %v888 = vunpack.c.l.b16 %v457
        %v889 = vunpack.c.l.b16 %v458
        %v890 = vunpack.c.l.b16 %v459
        %v891 = vpack.c.b16 %v888, %v887
        %v892 = vpack.c.b16 %v890, %v889
        %895 = vmatprep.subr.bf16.mxu0 0
        %896 = vmatpush1.bf16.msra.mxu0 %v891
        %897 = vmatprep.subr.bf16.mxu0 0
        %898 = vmatpush1.bf16.msra.mxu0 %v892
        %899 = vmatprep.subr.bf16.mxu0 0
        %900 = vmatpush1.bf16.msra.mxu0 0
        %901 = vmatprep.subr.bf16.mxu0 0
        %902 = vmatpush1.bf16.msra.mxu0 0
        %903 = vmatprep.subr.bf16.mxu0 0
        %904 = vmatpush1.bf16.msra.mxu0 0
        %905 = vmatprep.subr.bf16.mxu0 0
        %906 = vmatpush1.bf16.msra.mxu0 0
        %907 = vmatprep.subr.bf16.mxu0 0
        %908 = vmatpush1.bf16.msra.mxu0 0
        %909 = vmatprep.subr.bf16.mxu0 0
        %910 = vmatpush1.bf16.msra.mxu0 0
        %911 = vmatprep.subr.bf16.mxu0 0
        %912 = vmatpush1.bf16.msra.mxu0 0
        %913 = vmatprep.subr.bf16.mxu0 0
        %914 = vmatpush1.bf16.msra.mxu0 0
        %915 = vmatprep.subr.bf16.mxu0 0
        %916 = vmatpush1.bf16.msra.mxu0 0
        %917 = vmatprep.subr.bf16.mxu0 0
        %918 = vmatpush1.bf16.msra.mxu0 0
        %919 = vmatprep.subr.bf16.mxu0 0
        %920 = vmatpush1.bf16.msra.mxu0 0
        %921 = vmatprep.subr.bf16.mxu0 0
        %922 = vmatpush1.bf16.msra.mxu0 0
        %923 = vmatprep.subr.bf16.mxu0 0
        %924 = vmatpush1.bf16.msra.mxu0 0
        %925 = vmatprep.subr.bf16.mxu0 0
        %926 = vmatpush1.bf16.msra.mxu0 0
        %927 = vmatprep.mubr.bf16.mxu0 0
        %928 = vmatmul.mubr.bf16.gmra.mrb[0].mxu0 %v633
        %v929 = vpop.f32.mrb[0].mxu0
        %v930 = vadd.f32 %v582, %v929
        %v931 = vpop.f32.mrb[0].mxu0
        %v932 = vpop.f32.mrb[0].mxu0
        %v933 = vpop.f32.mrb[0].mxu0
        %934 = vdwg.mxu0
        %v939 = vunpack.c.l.b16 %v460
        %v940 = vunpack.c.l.b16 %v461
        %v941 = vunpack.c.l.b16 %v462
        %v942 = vunpack.c.l.b16 %v463
        %v943 = vpack.c.b16 %v940, %v939
        %v944 = vpack.c.b16 %v942, %v941
        %947 = vmatprep.subr.bf16.mxu0 0
        %948 = vmatpush1.bf16.msra.mxu0 %v943
        %949 = vmatprep.subr.bf16.mxu0 0
        %950 = vmatpush1.bf16.msra.mxu0 %v944
        %951 = vmatprep.subr.bf16.mxu0 0
        %952 = vmatpush1.bf16.msra.mxu0 0
        %953 = vmatprep.subr.bf16.mxu0 0
        %954 = vmatpush1.bf16.msra.mxu0 0
        %955 = vmatprep.subr.bf16.mxu0 0
        %956 = vmatpush1.bf16.msra.mxu0 0
        %957 = vmatprep.subr.bf16.mxu0 0
        %958 = vmatpush1.bf16.msra.mxu0 0
        %959 = vmatprep.subr.bf16.mxu0 0
        %960 = vmatpush1.bf16.msra.mxu0 0
        %961 = vmatprep.subr.bf16.mxu0 0
        %962 = vmatpush1.bf16.msra.mxu0 0
        %963 = vmatprep.subr.bf16.mxu0 0
        %964 = vmatpush1.bf16.msra.mxu0 0
        %965 = vmatprep.subr.bf16.mxu0 0
        %966 = vmatpush1.bf16.msra.mxu0 0
        %967 = vmatprep.subr.bf16.mxu0 0
        %968 = vmatpush1.bf16.msra.mxu0 0
        %969 = vmatprep.subr.bf16.mxu0 0
        %970 = vmatpush1.bf16.msra.mxu0 0
        %971 = vmatprep.subr.bf16.mxu0 0
        %972 = vmatpush1.bf16.msra.mxu0 0
        %973 = vmatprep.subr.bf16.mxu0 0
        %974 = vmatpush1.bf16.msra.mxu0 0
        %975 = vmatprep.subr.bf16.mxu0 0
        %976 = vmatpush1.bf16.msra.mxu0 0
        %977 = vmatprep.subr.bf16.mxu0 0
        %978 = vmatpush1.bf16.msra.mxu0 0
        %979 = vmatprep.mubr.bf16.mxu0 0
        %980 = vmatmul.mubr.bf16.gmra.mrb[0].mxu0 %v633
        %v981 = vpop.f32.mrb[0].mxu0
        %v982 = vadd.f32 %v586, %v981
        %v983 = vpop.f32.mrb[0].mxu0
        %v984 = vpop.f32.mrb[0].mxu0
        %v985 = vpop.f32.mrb[0].mxu0
        %986 = vdwg.mxu0
        %v991 = vunpack.c.l.b16 %v464
        %v992 = vunpack.c.l.b16 %v465
        %v993 = vunpack.c.l.b16 %v466
        %v994 = vunpack.c.l.b16 %v467
        %v995 = vpack.c.b16 %v992, %v991
        %v996 = vpack.c.b16 %v994, %v993
        %999 = vmatprep.subr.bf16.mxu0 0
        %1000 = vmatpush1.bf16.msra.mxu0 %v995
        %1001 = vmatprep.subr.bf16.mxu0 0
        %1002 = vmatpush1.bf16.msra.mxu0 %v996
        %1003 = vmatprep.subr.bf16.mxu0 0
        %1004 = vmatpush1.bf16.msra.mxu0 0
        %1005 = vmatprep.subr.bf16.mxu0 0
        %1006 = vmatpush1.bf16.msra.mxu0 0
        %1007 = vmatprep.subr.bf16.mxu0 0
        %1008 = vmatpush1.bf16.msra.mxu0 0
        %1009 = vmatprep.subr.bf16.mxu0 0
        %1010 = vmatpush1.bf16.msra.mxu0 0
        %1011 = vmatprep.subr.bf16.mxu0 0
        %1012 = vmatpush1.bf16.msra.mxu0 0
        %1013 = vmatprep.subr.bf16.mxu0 0
        %1014 = vmatpush1.bf16.msra.mxu0 0
        %1015 = vmatprep.subr.bf16.mxu0 0
        %1016 = vmatpush1.bf16.msra.mxu0 0
        %1017 = vmatprep.subr.bf16.mxu0 0
        %1018 = vmatpush1.bf16.msra.mxu0 0
        %1019 = vmatprep.subr.bf16.mxu0 0
        %1020 = vmatpush1.bf16.msra.mxu0 0
        %1021 = vmatprep.subr.bf16.mxu0 0
        %1022 = vmatpush1.bf16.msra.mxu0 0
        %1023 = vmatprep.subr.bf16.mxu0 0
        %1024 = vmatpush1.bf16.msra.mxu0 0
        %1025 = vmatprep.subr.bf16.mxu0 0
        %1026 = vmatpush1.bf16.msra.mxu0 0
        %1027 = vmatprep.subr.bf16.mxu0 0
        %1028 = vmatpush1.bf16.msra.mxu0 0
        %1029 = vmatprep.subr.bf16.mxu0 0
        %1030 = vmatpush1.bf16.msra.mxu0 0
        %1031 = vmatprep.mubr.bf16.mxu0 0
        %1032 = vmatmul.mubr.bf16.gmra.mrb[0].mxu0 %v633
        %v1033 = vpop.f32.mrb[0].mxu0
        %v1034 = vadd.f32 %v590, %v1033
        %v1035 = vpop.f32.mrb[0].mxu0
        %v1036 = vpop.f32.mrb[0].mxu0
        %v1037 = vpop.f32.mrb[0].mxu0
        %1038 = vdwg.mxu0
        %v1043 = vunpack.c.l.b16 %v468
        %v1044 = vunpack.c.l.b16 %v469
        %v1045 = vunpack.c.l.b16 %v470
        %v1046 = vunpack.c.l.b16 %v471
        %v1047 = vpack.c.b16 %v1044, %v1043
        %v1048 = vpack.c.b16 %v1046, %v1045
        %1051 = vmatprep.subr.bf16.mxu0 0
        %1052 = vmatpush1.bf16.msra.mxu0 %v1047
        %1053 = vmatprep.subr.bf16.mxu0 0
        %1054 = vmatpush1.bf16.msra.mxu0 %v1048
        %1055 = vmatprep.subr.bf16.mxu0 0
        %1056 = vmatpush1.bf16.msra.mxu0 0
        %1057 = vmatprep.subr.bf16.mxu0 0
        %1058 = vmatpush1.bf16.msra.mxu0 0
        %1059 = vmatprep.subr.bf16.mxu0 0
        %1060 = vmatpush1.bf16.msra.mxu0 0
        %1061 = vmatprep.subr.bf16.mxu0 0
        %1062 = vmatpush1.bf16.msra.mxu0 0
        %1063 = vmatprep.subr.bf16.mxu0 0
        %1064 = vmatpush1.bf16.msra.mxu0 0
        %1065 = vmatprep.subr.bf16.mxu0 0
        %1066 = vmatpush1.bf16.msra.mxu0 0
        %1067 = vmatprep.subr.bf16.mxu0 0
        %1068 = vmatpush1.bf16.msra.mxu0 0
        %1069 = vmatprep.subr.bf16.mxu0 0
        %1070 = vmatpush1.bf16.msra.mxu0 0
        %1071 = vmatprep.subr.bf16.mxu0 0
        %1072 = vmatpush1.bf16.msra.mxu0 0
        %1073 = vmatprep.subr.bf16.mxu0 0
        %1074 = vmatpush1.bf16.msra.mxu0 0
        %1075 = vmatprep.subr.bf16.mxu0 0
        %1076 = vmatpush1.bf16.msra.mxu0 0
        %1077 = vmatprep.subr.bf16.mxu0 0
        %1078 = vmatpush1.bf16.msra.mxu0 0
        %1079 = vmatprep.subr.bf16.mxu0 0
        %1080 = vmatpush1.bf16.msra.mxu0 0
        %1081 = vmatprep.subr.bf16.mxu0 0
        %1082 = vmatpush1.bf16.msra.mxu0 0
        %1083 = vmatprep.mubr.bf16.mxu0 0
        %1084 = vmatmul.mubr.bf16.gmra.mrb[0].mxu0 %v633
        %v1085 = vpop.f32.mrb[0].mxu0
        %v1086 = vadd.f32 %v594, %v1085
        %v1087 = vpop.f32.mrb[0].mxu0
        %v1088 = vpop.f32.mrb[0].mxu0
        %v1089 = vpop.f32.mrb[0].mxu0
        %1090 = vdwg.mxu0
        %v1095 = vunpack.c.l.b16 %v472
        %v1096 = vunpack.c.l.b16 %v473
        %v1097 = vunpack.c.l.b16 %v474
        %v1098 = vunpack.c.l.b16 %v475
        %v1099 = vpack.c.b16 %v1096, %v1095
        %v1100 = vpack.c.b16 %v1098, %v1097
        %1103 = vmatprep.subr.bf16.mxu0 0
        %1104 = vmatpush1.bf16.msra.mxu0 %v1099
        %1105 = vmatprep.subr.bf16.mxu0 0
        %1106 = vmatpush1.bf16.msra.mxu0 %v1100
        %1107 = vmatprep.subr.bf16.mxu0 0
        %1108 = vmatpush1.bf16.msra.mxu0 0
        %1109 = vmatprep.subr.bf16.mxu0 0
        %1110 = vmatpush1.bf16.msra.mxu0 0
        %1111 = vmatprep.subr.bf16.mxu0 0
        %1112 = vmatpush1.bf16.msra.mxu0 0
        %1113 = vmatprep.subr.bf16.mxu0 0
        %1114 = vmatpush1.bf16.msra.mxu0 0
        %1115 = vmatprep.subr.bf16.mxu0 0
        %1116 = vmatpush1.bf16.msra.mxu0 0
        %1117 = vmatprep.subr.bf16.mxu0 0
        %1118 = vmatpush1.bf16.msra.mxu0 0
        %1119 = vmatprep.subr.bf16.mxu0 0
        %1120 = vmatpush1.bf16.msra.mxu0 0
        %1121 = vmatprep.subr.bf16.mxu0 0
        %1122 = vmatpush1.bf16.msra.mxu0 0
        %1123 = vmatprep.subr.bf16.mxu0 0
        %1124 = vmatpush1.bf16.msra.mxu0 0
        %1125 = vmatprep.subr.bf16.mxu0 0
        %1126 = vmatpush1.bf16.msra.mxu0 0
        %1127 = vmatprep.subr.bf16.mxu0 0
        %1128 = vmatpush1.bf16.msra.mxu0 0
        %1129 = vmatprep.subr.bf16.mxu0 0
        %1130 = vmatpush1.bf16.msra.mxu0 0
        %1131 = vmatprep.subr.bf16.mxu0 0
        %1132 = vmatpush1.bf16.msra.mxu0 0
        %1133 = vmatprep.subr.bf16.mxu0 0
        %1134 = vmatpush1.bf16.msra.mxu0 0
        %1135 = vmatprep.mubr.bf16.mxu0 0
        %1136 = vmatmul.mubr.bf16.gmra.mrb[0].mxu0 %v633
        %v1137 = vpop.f32.mrb[0].mxu0
        %v1138 = vadd.f32 %v598, %v1137
        %v1139 = vpop.f32.mrb[0].mxu0
        %v1140 = vpop.f32.mrb[0].mxu0
        %v1141 = vpop.f32.mrb[0].mxu0
        %1142 = vdwg.mxu0
        %v1147 = vunpack.c.l.b16 %v476
        %v1148 = vunpack.c.l.b16 %v477
        %v1149 = vunpack.c.l.b16 %v478
        %v1150 = vunpack.c.l.b16 %v479
        %v1151 = vpack.c.b16 %v1148, %v1147
        %v1152 = vpack.c.b16 %v1150, %v1149
        %1155 = vmatprep.subr.bf16.mxu0 0
        %1156 = vmatpush1.bf16.msra.mxu0 %v1151
        %1157 = vmatprep.subr.bf16.mxu0 0
        %1158 = vmatpush1.bf16.msra.mxu0 %v1152
        %1159 = vmatprep.subr.bf16.mxu0 0
        %1160 = vmatpush1.bf16.msra.mxu0 0
        %1161 = vmatprep.subr.bf16.mxu0 0
        %1162 = vmatpush1.bf16.msra.mxu0 0
        %1163 = vmatprep.subr.bf16.mxu0 0
        %1164 = vmatpush1.bf16.msra.mxu0 0
        %1165 = vmatprep.subr.bf16.mxu0 0
        %1166 = vmatpush1.bf16.msra.mxu0 0
        %1167 = vmatprep.subr.bf16.mxu0 0
        %1168 = vmatpush1.bf16.msra.mxu0 0
        %1169 = vmatprep.subr.bf16.mxu0 0
        %1170 = vmatpush1.bf16.msra.mxu0 0
        %1171 = vmatprep.subr.bf16.mxu0 0
        %1172 = vmatpush1.bf16.msra.mxu0 0
        %1173 = vmatprep.subr.bf16.mxu0 0
        %1174 = vmatpush1.bf16.msra.mxu0 0
        %1175 = vmatprep.subr.bf16.mxu0 0
        %1176 = vmatpush1.bf16.msra.mxu0 0
        %1177 = vmatprep.subr.bf16.mxu0 0
        %1178 = vmatpush1.bf16.msra.mxu0 0
        %1179 = vmatprep.subr.bf16.mxu0 0
        %1180 = vmatpush1.bf16.msra.mxu0 0
        %1181 = vmatprep.subr.bf16.mxu0 0
        %1182 = vmatpush1.bf16.msra.mxu0 0
        %1183 = vmatprep.subr.bf16.mxu0 0
        %1184 = vmatpush1.bf16.msra.mxu0 0
        %1185 = vmatprep.subr.bf16.mxu0 0
        %1186 = vmatpush1.bf16.msra.mxu0 0
        %1187 = vmatprep.mubr.bf16.mxu0 0
        %1188 = vmatmul.mubr.bf16.gmra.mrb[0].mxu0 %v633
        %v1189 = vpop.f32.mrb[0].mxu0
        %v1190 = vadd.f32 %v602, %v1189
        %v1191 = vpop.f32.mrb[0].mxu0
        %v1192 = vpop.f32.mrb[0].mxu0
        %v1193 = vpop.f32.mrb[0].mxu0
        %1194 = vdwg.mxu0
        %v1199 = vunpack.c.l.b16 %v480
        %v1200 = vunpack.c.l.b16 %v481
        %v1201 = vunpack.c.l.b16 %v482
        %v1202 = vunpack.c.l.b16 %v483
        %v1203 = vpack.c.b16 %v1200, %v1199
        %v1204 = vpack.c.b16 %v1202, %v1201
        %1207 = vmatprep.subr.bf16.mxu0 0
        %1208 = vmatpush1.bf16.msra.mxu0 %v1203
        %1209 = vmatprep.subr.bf16.mxu0 0
        %1210 = vmatpush1.bf16.msra.mxu0 %v1204
        %1211 = vmatprep.subr.bf16.mxu0 0
        %1212 = vmatpush1.bf16.msra.mxu0 0
        %1213 = vmatprep.subr.bf16.mxu0 0
        %1214 = vmatpush1.bf16.msra.mxu0 0
        %1215 = vmatprep.subr.bf16.mxu0 0
        %1216 = vmatpush1.bf16.msra.mxu0 0
        %1217 = vmatprep.subr.bf16.mxu0 0
        %1218 = vmatpush1.bf16.msra.mxu0 0
        %1219 = vmatprep.subr.bf16.mxu0 0
        %1220 = vmatpush1.bf16.msra.mxu0 0
        %1221 = vmatprep.subr.bf16.mxu0 0
        %1222 = vmatpush1.bf16.msra.mxu0 0
        %1223 = vmatprep.subr.bf16.mxu0 0
        %1224 = vmatpush1.bf16.msra.mxu0 0
        %1225 = vmatprep.subr.bf16.mxu0 0
        %1226 = vmatpush1.bf16.msra.mxu0 0
        %1227 = vmatprep.subr.bf16.mxu0 0
        %1228 = vmatpush1.bf16.msra.mxu0 0
        %1229 = vmatprep.subr.bf16.mxu0 0
        %1230 = vmatpush1.bf16.msra.mxu0 0
        %1231 = vmatprep.subr.bf16.mxu0 0
        %1232 = vmatpush1.bf16.msra.mxu0 0
        %1233 = vmatprep.subr.bf16.mxu0 0
        %1234 = vmatpush1.bf16.msra.mxu0 0
        %1235 = vmatprep.subr.bf16.mxu0 0
        %1236 = vmatpush1.bf16.msra.mxu0 0
        %1237 = vmatprep.subr.bf16.mxu0 0
        %1238 = vmatpush1.bf16.msra.mxu0 0
        %1239 = vmatprep.mubr.bf16.mxu0 0
        %1240 = vmatmul.mubr.bf16.gmra.mrb[0].mxu0 %v633
        %v1241 = vpop.f32.mrb[0].mxu0
        %v1242 = vadd.f32 %v606, %v1241
        %v1243 = vpop.f32.mrb[0].mxu0
        %v1244 = vpop.f32.mrb[0].mxu0
        %v1245 = vpop.f32.mrb[0].mxu0
        %1246 = vdwg.mxu0
        %v1247 = vpack.c.bf16 %v670, %v670
        %v1248 = vpack.c.bf16 %v722, %v722
        %v1249 = vpack.c.bf16 %v774, %v774
        %v1250 = vpack.c.bf16 %v826, %v826
        %v1251 = vpack.c.bf16 %v878, %v878
        %v1252 = vpack.c.bf16 %v930, %v930
        %v1253 = vpack.c.bf16 %v982, %v982
        %v1254 = vpack.c.bf16 %v1034, %v1034
        %vm1255 = vcmask 64512
        %v1257 = vsel %vm1255, %v1247, 0
        %v1260 = vsel %vm1255, %v1251, 0
        %1262 = vmatprep.subr.bf16.mxu0 0
        %1263 = vmatpush1.bf16.xpose.msra.mxu0 %v1260
        %1264 = vmatprep.subr.bf16.mxu0 0
        %1265 = vmatpush1.bf16.xpose.msra.mxu0 0
        %1266 = vmatprep.subr.bf16.mxu0 0
        %1267 = vmatpush1.bf16.xpose.msra.mxu0 0
        %1268 = vmatprep.subr.bf16.mxu0 0
        %1269 = vmatpush1.bf16.xpose.msra.mxu0 0
        %1270 = vmatprep.subr.bf16.mxu0 0
        %1271 = vmatpush1.bf16.xpose.msra.mxu0 0
        %1272 = vmatprep.subr.bf16.mxu0 0
        %1273 = vmatpush1.bf16.xpose.msra.mxu0 0
        %1274 = vmatprep.subr.bf16.mxu0 0
        %1275 = vmatpush1.bf16.xpose.msra.mxu0 0
        %1276 = vmatprep.subr.bf16.mxu0 0
        %1277 = vmatpush1.bf16.xpose.msra.mxu0 0
        %1278 = vmatprep.subr.bf16.mxu0 0
        %1279 = vmatpush1.bf16.xpose.msra.mxu0 0
        %1280 = vmatprep.subr.bf16.mxu0 0
        %1281 = vmatpush1.bf16.xpose.msra.mxu0 0
        %1282 = vmatprep.subr.bf16.mxu0 0
        %1283 = vmatpush1.bf16.xpose.msra.mxu0 0
        %1284 = vmatprep.subr.bf16.mxu0 0
        %1285 = vmatpush1.bf16.xpose.msra.mxu0 0
        %1286 = vmatprep.subr.bf16.mxu0 0
        %1287 = vmatpush1.bf16.xpose.msra.mxu0 0
        %1288 = vmatprep.subr.bf16.mxu0 0
        %1289 = vmatpush1.bf16.xpose.msra.mxu0 0
        %1290 = vmatprep.subr.bf16.mxu0 0
        %1291 = vmatpush1.bf16.xpose.msra.mxu0 0
        %1292 = vmatprep.subr.bf16.mxu0 0
        %1293 = vmatpush1.bf16.xpose.msra.mxu0 0
        %1294 = vmatprep.mubr.bf16.mxu0 0
        %1295 = vmatmul.mubr.bf16.gmra.mrb[0].mxu0 %v1257
        %v1296 = vpop.f32.mrb[0].mxu0
        %v1297 = vadd.f32 0.0, %v1296
        %v1298 = vpop.f32.mrb[0].mxu0
        %v1299 = vpop.f32.mrb[0].mxu0
        %v1300 = vpop.f32.mrb[0].mxu0
        %1301 = vdwg.mxu0
        %v1303 = vsel %vm1255, %v1248, 0
        %v1306 = vsel %vm1255, %v1252, 0
        %1308 = vmatprep.subr.bf16.mxu0 0
        %1309 = vmatpush1.bf16.xpose.msra.mxu0 %v1306
        %1310 = vmatprep.subr.bf16.mxu0 0
        %1311 = vmatpush1.bf16.xpose.msra.mxu0 0
        %1312 = vmatprep.subr.bf16.mxu0 0
        %1313 = vmatpush1.bf16.xpose.msra.mxu0 0
        %1314 = vmatprep.subr.bf16.mxu0 0
        %1315 = vmatpush1.bf16.xpose.msra.mxu0 0
        %1316 = vmatprep.subr.bf16.mxu0 0
        %1317 = vmatpush1.bf16.xpose.msra.mxu0 0
        %1318 = vmatprep.subr.bf16.mxu0 0
        %1319 = vmatpush1.bf16.xpose.msra.mxu0 0
        %1320 = vmatprep.subr.bf16.mxu0 0
        %1321 = vmatpush1.bf16.xpose.msra.mxu0 0
        %1322 = vmatprep.subr.bf16.mxu0 0
        %1323 = vmatpush1.bf16.xpose.msra.mxu0 0
        %1324 = vmatprep.subr.bf16.mxu0 0
        %1325 = vmatpush1.bf16.xpose.msra.mxu0 0
        %1326 = vmatprep.subr.bf16.mxu0 0
        %1327 = vmatpush1.bf16.xpose.msra.mxu0 0
        %1328 = vmatprep.subr.bf16.mxu0 0
        %1329 = vmatpush1.bf16.xpose.msra.mxu0 0
        %1330 = vmatprep.subr.bf16.mxu0 0
        %1331 = vmatpush1.bf16.xpose.msra.mxu0 0
        %1332 = vmatprep.subr.bf16.mxu0 0
        %1333 = vmatpush1.bf16.xpose.msra.mxu0 0
        %1334 = vmatprep.subr.bf16.mxu0 0
        %1335 = vmatpush1.bf16.xpose.msra.mxu0 0
        %1336 = vmatprep.subr.bf16.mxu0 0
        %1337 = vmatpush1.bf16.xpose.msra.mxu0 0
        %1338 = vmatprep.subr.bf16.mxu0 0
        %1339 = vmatpush1.bf16.xpose.msra.mxu0 0
        %1340 = vmatprep.mubr.bf16.mxu0 0
        %1341 = vmatmul.mubr.bf16.gmra.mrb[0].mxu0 %v1303
        %v1342 = vpop.f32.mrb[0].mxu0
        %v1343 = vadd.f32 0.0, %v1342
        %v1344 = vpop.f32.mrb[0].mxu0
        %v1345 = vpop.f32.mrb[0].mxu0
        %v1346 = vpop.f32.mrb[0].mxu0
        %1347 = vdwg.mxu0
        %v1349 = vsel %vm1255, %v1249, 0
        %v1352 = vsel %vm1255, %v1253, 0
        %1354 = vmatprep.subr.bf16.mxu0 0
        %1355 = vmatpush1.bf16.xpose.msra.mxu0 %v1352
        %1356 = vmatprep.subr.bf16.mxu0 0
        %1357 = vmatpush1.bf16.xpose.msra.mxu0 0
        %1358 = vmatprep.subr.bf16.mxu0 0
        %1359 = vmatpush1.bf16.xpose.msra.mxu0 0
        %1360 = vmatprep.subr.bf16.mxu0 0
        %1361 = vmatpush1.bf16.xpose.msra.mxu0 0
        %1362 = vmatprep.subr.bf16.mxu0 0
        %1363 = vmatpush1.bf16.xpose.msra.mxu0 0
        %1364 = vmatprep.subr.bf16.mxu0 0
        %1365 = vmatpush1.bf16.xpose.msra.mxu0 0
        %1366 = vmatprep.subr.bf16.mxu0 0
        %1367 = vmatpush1.bf16.xpose.msra.mxu0 0
        %1368 = vmatprep.subr.bf16.mxu0 0
        %1369 = vmatpush1.bf16.xpose.msra.mxu0 0
        %1370 = vmatprep.subr.bf16.mxu0 0
        %1371 = vmatpush1.bf16.xpose.msra.mxu0 0
        %1372 = vmatprep.subr.bf16.mxu0 0
        %1373 = vmatpush1.bf16.xpose.msra.mxu0 0
        %1374 = vmatprep.subr.bf16.mxu0 0
        %1375 = vmatpush1.bf16.xpose.msra.mxu0 0
        %1376 = vmatprep.subr.bf16.mxu0 0
        %1377 = vmatpush1.bf16.xpose.msra.mxu0 0
        %1378 = vmatprep.subr.bf16.mxu0 0
        %1379 = vmatpush1.bf16.xpose.msra.mxu0 0
        %1380 = vmatprep.subr.bf16.mxu0 0
        %1381 = vmatpush1.bf16.xpose.msra.mxu0 0
        %1382 = vmatprep.subr.bf16.mxu0 0
        %1383 = vmatpush1.bf16.xpose.msra.mxu0 0
        %1384 = vmatprep.subr.bf16.mxu0 0
        %1385 = vmatpush1.bf16.xpose.msra.mxu0 0
        %1386 = vmatprep.mubr.bf16.mxu0 0
        %1387 = vmatmul.mubr.bf16.gmra.mrb[0].mxu0 %v1349
        %v1388 = vpop.f32.mrb[0].mxu0
        %v1389 = vadd.f32 0.0, %v1388
        %v1390 = vpop.f32.mrb[0].mxu0
        %v1391 = vpop.f32.mrb[0].mxu0
        %v1392 = vpop.f32.mrb[0].mxu0
        %1393 = vdwg.mxu0
        %v1395 = vsel %vm1255, %v1250, 0
        %v1398 = vsel %vm1255, %v1254, 0
        %1400 = vmatprep.subr.bf16.mxu0 0
        %1401 = vmatpush1.bf16.xpose.msra.mxu0 %v1398
        %1402 = vmatprep.subr.bf16.mxu0 0
        %1403 = vmatpush1.bf16.xpose.msra.mxu0 0
        %1404 = vmatprep.subr.bf16.mxu0 0
        %1405 = vmatpush1.bf16.xpose.msra.mxu0 0
        %1406 = vmatprep.subr.bf16.mxu0 0
        %1407 = vmatpush1.bf16.xpose.msra.mxu0 0
        %1408 = vmatprep.subr.bf16.mxu0 0
        %1409 = vmatpush1.bf16.xpose.msra.mxu0 0
        %1410 = vmatprep.subr.bf16.mxu0 0
        %1411 = vmatpush1.bf16.xpose.msra.mxu0 0
        %1412 = vmatprep.subr.bf16.mxu0 0
        %1413 = vmatpush1.bf16.xpose.msra.mxu0 0
        %1414 = vmatprep.subr.bf16.mxu0 0
        %1415 = vmatpush1.bf16.xpose.msra.mxu0 0
        %1416 = vmatprep.subr.bf16.mxu0 0
        %1417 = vmatpush1.bf16.xpose.msra.mxu0 0
        %1418 = vmatprep.subr.bf16.mxu0 0
        %1419 = vmatpush1.bf16.xpose.msra.mxu0 0
        %1420 = vmatprep.subr.bf16.mxu0 0
        %1421 = vmatpush1.bf16.xpose.msra.mxu0 0
        %1422 = vmatprep.subr.bf16.mxu0 0
        %1423 = vmatpush1.bf16.xpose.msra.mxu0 0
        %1424 = vmatprep.subr.bf16.mxu0 0
        %1425 = vmatpush1.bf16.xpose.msra.mxu0 0
        %1426 = vmatprep.subr.bf16.mxu0 0
        %1427 = vmatpush1.bf16.xpose.msra.mxu0 0
        %1428 = vmatprep.subr.bf16.mxu0 0
        %1429 = vmatpush1.bf16.xpose.msra.mxu0 0
        %1430 = vmatprep.subr.bf16.mxu0 0
        %1431 = vmatpush1.bf16.xpose.msra.mxu0 0
        %1432 = vmatprep.mubr.bf16.mxu0 0
        %1433 = vmatmul.mubr.bf16.gmra.mrb[0].mxu0 %v1395
        %v1434 = vpop.f32.mrb[0].mxu0
        %v1435 = vadd.f32 0.0, %v1434
        %v1436 = vpop.f32.mrb[0].mxu0
        %v1437 = vpop.f32.mrb[0].mxu0
        %v1438 = vpop.f32.mrb[0].mxu0
        %1439 = vdwg.mxu0
        %v1440 = vmul.f32 %v1297, 0.35355338
        %v1441 = vmul.f32 %v1343, 0.35355338
        %v1442 = vmul.f32 %v1389, 0.35355338
        %v1443 = vmul.f32 %v1435, 0.35355338
        %v1444 = vld [vmem:[%s373] sm:$0x1]
        %v1446 = vlaneseq
        %v1447 = vshrl.u32 %v1446, 7
        %v1448 = vsub.s32 0, %v1447
        %v1449 = vrot.slane %v1444, %v1448
        %v1451 = vadd.f32 %v1440, %v1449
        %v1452 = vadd.f32 %v1441, %v1449
        %v1453 = vadd.f32 %v1442, %v1449
        %v1454 = vadd.f32 %v1443, %v1449
        %v1455 = vsel %vm1255, %v1451, -inf
        %1456 = vmax.xlane.f32.xlu0 %v1455
        %v1457 = vpop.xlane.xlu0 %1456
        %v1458 = vsel %vm1255, %v1452, -inf
        %1459 = vmax.xlane.f32.xlu0 %v1458
        %v1460 = vpop.xlane.xlu0 %1459
        %v1461 = vsel %vm1255, %v1453, -inf
        %1462 = vmax.xlane.f32.xlu0 %v1461
        %v1463 = vpop.xlane.xlu0 %1462
        %v1464 = vsel %vm1255, %v1454, -inf
        %1465 = vmax.xlane.f32.xlu0 %v1464
        %v1466 = vpop.xlane.xlu0 %1465
        %v1467 = vsub.f32 %v1451, %v1457
        %v1468 = vsub.f32 %v1452, %v1460
        %v1469 = vsub.f32 %v1453, %v1463
        %v1470 = vsub.f32 %v1454, %v1466
        %v1471 = vmul.f32 %v1467, 1.442695
        %v1472 = vpow.pop %v1471
        %v1473 = vmul.f32 %v1468, 1.442695
        %v1474 = vpow.pop %v1473
        %v1475 = vmul.f32 %v1469, 1.442695
        %v1476 = vpow.pop %v1475
        %v1477 = vmul.f32 %v1470, 1.442695
        %v1478 = vpow.pop %v1477
        %v1479 = vsel %vm1255, %v1472, 0.0
        %1480 = vadd.xlane.f32.xlu0 %v1479
        %v1481 = vpop.xlane.xlu0 %1480
        %v1482 = vsel %vm1255, %v1474, 0.0
        %1483 = vadd.xlane.f32.xlu0 %v1482
        %v1484 = vpop.xlane.xlu0 %1483
        %v1485 = vsel %vm1255, %v1476, 0.0
        %1486 = vadd.xlane.f32.xlu0 %v1485
        %v1487 = vpop.xlane.xlu0 %1486
        %v1488 = vsel %vm1255, %v1478, 0.0
        %1489 = vadd.xlane.f32.xlu0 %v1488
        %v1490 = vpop.xlane.xlu0 %1489
        %v1491 = vrcp.pop %v1481
        %v1492 = vrcp.pop %v1484
        %v1493 = vrcp.pop %v1487
        %v1494 = vrcp.pop %v1490
        %v1495 = vmul.f32 %v1472, %v1491
        %v1496 = vmul.f32 %v1474, %v1492
        %v1497 = vmul.f32 %v1476, %v1493
        %v1498 = vmul.f32 %v1478, %v1494
        %v1499 = vpack.c.bf16 %v1495, %v1495
        %v1500 = vpack.c.bf16 %v1496, %v1496
        %v1501 = vpack.c.bf16 %v1497, %v1497
        %v1502 = vpack.c.bf16 %v1498, %v1498
        %v1503 = vpack.c.bf16 %v1086, %v1086
        %v1504 = vpack.c.bf16 %v1138, %v1138
        %v1505 = vpack.c.bf16 %v1190, %v1190
        %v1506 = vpack.c.bf16 %v1242, %v1242
        %v1508 = vsel %vm1255, %v1499, 0
        %vm1510 = vcmask 1043456
        %v1512 = vsel %vm1510, %v1503, 0
        %1514 = vmatprep.subr.bf16.mxu0 0
        %1515 = vmatpush1.bf16.msra.mxu0 %v1512
        %1516 = vmatprep.subr.bf16.mxu0 0
        %1517 = vmatpush1.bf16.msra.mxu0 0
        %1518 = vmatprep.subr.bf16.mxu0 0
        %1519 = vmatpush1.bf16.msra.mxu0 0
        %1520 = vmatprep.subr.bf16.mxu0 0
        %1521 = vmatpush1.bf16.msra.mxu0 0
        %1522 = vmatprep.subr.bf16.mxu0 0
        %1523 = vmatpush1.bf16.msra.mxu0 0
        %1524 = vmatprep.subr.bf16.mxu0 0
        %1525 = vmatpush1.bf16.msra.mxu0 0
        %1526 = vmatprep.subr.bf16.mxu0 0
        %1527 = vmatpush1.bf16.msra.mxu0 0
        %1528 = vmatprep.subr.bf16.mxu0 0
        %1529 = vmatpush1.bf16.msra.mxu0 0
        %1530 = vmatprep.subr.bf16.mxu0 0
        %1531 = vmatpush1.bf16.msra.mxu0 0
        %1532 = vmatprep.subr.bf16.mxu0 0
        %1533 = vmatpush1.bf16.msra.mxu0 0
        %1534 = vmatprep.subr.bf16.mxu0 0
        %1535 = vmatpush1.bf16.msra.mxu0 0
        %1536 = vmatprep.subr.bf16.mxu0 0
        %1537 = vmatpush1.bf16.msra.mxu0 0
        %1538 = vmatprep.subr.bf16.mxu0 0
        %1539 = vmatpush1.bf16.msra.mxu0 0
        %1540 = vmatprep.subr.bf16.mxu0 0
        %1541 = vmatpush1.bf16.msra.mxu0 0
        %1542 = vmatprep.subr.bf16.mxu0 0
        %1543 = vmatpush1.bf16.msra.mxu0 0
        %1544 = vmatprep.subr.bf16.mxu0 0
        %1545 = vmatpush1.bf16.msra.mxu0 0
        %1546 = vmatprep.mubr.bf16.mxu0 0
        %1547 = vmatmul.mubr.bf16.gmra.mrb[0].mxu0 %v1508
        %v1548 = vpop.f32.mrb[0].mxu0
        %v1549 = vadd.f32 0.0, %v1548
        %v1550 = vpop.f32.mrb[0].mxu0
        %v1551 = vpop.f32.mrb[0].mxu0
        %v1552 = vpop.f32.mrb[0].mxu0
        %1553 = vdwg.mxu0
        %v1555 = vsel %vm1255, %v1500, 0
        %v1558 = vsel %vm1510, %v1504, 0
        %1560 = vmatprep.subr.bf16.mxu0 0
        %1561 = vmatpush1.bf16.msra.mxu0 %v1558
        %1562 = vmatprep.subr.bf16.mxu0 0
        %1563 = vmatpush1.bf16.msra.mxu0 0
        %1564 = vmatprep.subr.bf16.mxu0 0
        %1565 = vmatpush1.bf16.msra.mxu0 0
        %1566 = vmatprep.subr.bf16.mxu0 0
        %1567 = vmatpush1.bf16.msra.mxu0 0
        %1568 = vmatprep.subr.bf16.mxu0 0
        %1569 = vmatpush1.bf16.msra.mxu0 0
        %1570 = vmatprep.subr.bf16.mxu0 0
        %1571 = vmatpush1.bf16.msra.mxu0 0
        %1572 = vmatprep.subr.bf16.mxu0 0
        %1573 = vmatpush1.bf16.msra.mxu0 0
        %1574 = vmatprep.subr.bf16.mxu0 0
        %1575 = vmatpush1.bf16.msra.mxu0 0
        %1576 = vmatprep.subr.bf16.mxu0 0
        %1577 = vmatpush1.bf16.msra.mxu0 0
        %1578 = vmatprep.subr.bf16.mxu0 0
        %1579 = vmatpush1.bf16.msra.mxu0 0
        %1580 = vmatprep.subr.bf16.mxu0 0
        %1581 = vmatpush1.bf16.msra.mxu0 0
        %1582 = vmatprep.subr.bf16.mxu0 0
        %1583 = vmatpush1.bf16.msra.mxu0 0
        %1584 = vmatprep.subr.bf16.mxu0 0
        %1585 = vmatpush1.bf16.msra.mxu0 0
        %1586 = vmatprep.subr.bf16.mxu0 0
        %1587 = vmatpush1.bf16.msra.mxu0 0
        %1588 = vmatprep.subr.bf16.mxu0 0
        %1589 = vmatpush1.bf16.msra.mxu0 0
        %1590 = vmatprep.subr.bf16.mxu0 0
        %1591 = vmatpush1.bf16.msra.mxu0 0
        %1592 = vmatprep.mubr.bf16.mxu0 0
        %1593 = vmatmul.mubr.bf16.gmra.mrb[0].mxu0 %v1555
        %v1594 = vpop.f32.mrb[0].mxu0
        %v1595 = vadd.f32 0.0, %v1594
        %v1596 = vpop.f32.mrb[0].mxu0
        %v1597 = vpop.f32.mrb[0].mxu0
        %v1598 = vpop.f32.mrb[0].mxu0
        %1599 = vdwg.mxu0
        %v1601 = vsel %vm1255, %v1501, 0
        %v1604 = vsel %vm1510, %v1505, 0
        %1606 = vmatprep.subr.bf16.mxu0 0
        %1607 = vmatpush1.bf16.msra.mxu0 %v1604
        %1608 = vmatprep.subr.bf16.mxu0 0
        %1609 = vmatpush1.bf16.msra.mxu0 0
        %1610 = vmatprep.subr.bf16.mxu0 0
        %1611 = vmatpush1.bf16.msra.mxu0 0
        %1612 = vmatprep.subr.bf16.mxu0 0
        %1613 = vmatpush1.bf16.msra.mxu0 0
        %1614 = vmatprep.subr.bf16.mxu0 0
        %1615 = vmatpush1.bf16.msra.mxu0 0
        %1616 = vmatprep.subr.bf16.mxu0 0
        %1617 = vmatpush1.bf16.msra.mxu0 0
        %1618 = vmatprep.subr.bf16.mxu0 0
        %1619 = vmatpush1.bf16.msra.mxu0 0
        %1620 = vmatprep.subr.bf16.mxu0 0
        %1621 = vmatpush1.bf16.msra.mxu0 0
        %1622 = vmatprep.subr.bf16.mxu0 0
        %1623 = vmatpush1.bf16.msra.mxu0 0
        %1624 = vmatprep.subr.bf16.mxu0 0
        %1625 = vmatpush1.bf16.msra.mxu0 0
        %1626 = vmatprep.subr.bf16.mxu0 0
        %1627 = vmatpush1.bf16.msra.mxu0 0
        %1628 = vmatprep.subr.bf16.mxu0 0
        %1629 = vmatpush1.bf16.msra.mxu0 0
        %1630 = vmatprep.subr.bf16.mxu0 0
        %1631 = vmatpush1.bf16.msra.mxu0 0
        %1632 = vmatprep.subr.bf16.mxu0 0
        %1633 = vmatpush1.bf16.msra.mxu0 0
        %1634 = vmatprep.subr.bf16.mxu0 0
        %1635 = vmatpush1.bf16.msra.mxu0 0
        %1636 = vmatprep.subr.bf16.mxu0 0
        %1637 = vmatpush1.bf16.msra.mxu0 0
        %1638 = vmatprep.mubr.bf16.mxu0 0
        %1639 = vmatmul.mubr.bf16.gmra.mrb[0].mxu0 %v1601
        %v1640 = vpop.f32.mrb[0].mxu0
        %v1641 = vadd.f32 0.0, %v1640
        %v1642 = vpop.f32.mrb[0].mxu0
        %v1643 = vpop.f32.mrb[0].mxu0
        %v1644 = vpop.f32.mrb[0].mxu0
        %1645 = vdwg.mxu0
        %v1647 = vsel %vm1255, %v1502, 0
        %v1650 = vsel %vm1510, %v1506, 0
        %1652 = vmatprep.subr.bf16.mxu0 0
        %1653 = vmatpush1.bf16.msra.mxu0 %v1650
        %1654 = vmatprep.subr.bf16.mxu0 0
        %1655 = vmatpush1.bf16.msra.mxu0 0
        %1656 = vmatprep.subr.bf16.mxu0 0
        %1657 = vmatpush1.bf16.msra.mxu0 0
        %1658 = vmatprep.subr.bf16.mxu0 0
        %1659 = vmatpush1.bf16.msra.mxu0 0
        %1660 = vmatprep.subr.bf16.mxu0 0
        %1661 = vmatpush1.bf16.msra.mxu0 0
        %1662 = vmatprep.subr.bf16.mxu0 0
        %1663 = vmatpush1.bf16.msra.mxu0 0
        %1664 = vmatprep.subr.bf16.mxu0 0
        %1665 = vmatpush1.bf16.msra.mxu0 0
        %1666 = vmatprep.subr.bf16.mxu0 0
        %1667 = vmatpush1.bf16.msra.mxu0 0
        %1668 = vmatprep.subr.bf16.mxu0 0
        %1669 = vmatpush1.bf16.msra.mxu0 0
        %1670 = vmatprep.subr.bf16.mxu0 0
        %1671 = vmatpush1.bf16.msra.mxu0 0
        %1672 = vmatprep.subr.bf16.mxu0 0
        %1673 = vmatpush1.bf16.msra.mxu0 0
        %1674 = vmatprep.subr.bf16.mxu0 0
        %1675 = vmatpush1.bf16.msra.mxu0 0
        %1676 = vmatprep.subr.bf16.mxu0 0
        %1677 = vmatpush1.bf16.msra.mxu0 0
        %1678 = vmatprep.subr.bf16.mxu0 0
        %1679 = vmatpush1.bf16.msra.mxu0 0
        %1680 = vmatprep.subr.bf16.mxu0 0
        %1681 = vmatpush1.bf16.msra.mxu0 0
        %1682 = vmatprep.subr.bf16.mxu0 0
        %1683 = vmatpush1.bf16.msra.mxu0 0
        %1684 = vmatprep.mubr.bf16.mxu0 0
        %1685 = vmatmul.mubr.bf16.gmra.mrb[0].mxu0 %v1647
        %v1686 = vpop.f32.mrb[0].mxu0
        %v1687 = vadd.f32 0.0, %v1686
        %v1688 = vpop.f32.mrb[0].mxu0
        %v1689 = vpop.f32.mrb[0].mxu0
        %v1690 = vpop.f32.mrb[0].mxu0
        %1691 = vdwg.mxu0
        %v1692 = vpack.c.bf16 %v1549, %v1549
        %v1693 = vpack.c.bf16 %v1595, %v1595
        %v1694 = vpack.c.bf16 %v1641, %v1641
        %v1695 = vpack.c.bf16 %v1687, %v1687
        %v1696 = vld [vmem:[%s383] sm:$0xf]
        %v1697 = vld [vmem:[%s383 + $0x4] sm:$0xf]
        %v1698 = vld [vmem:[%s383 + $0x8] sm:$0xf]
        %v1699 = vld [vmem:[%s383 + $0xc] sm:$0xf]
        %v1701 = vsel %vm1255, %v1692, 0
        %v1704 = vsel %vm1510, %v1696, 0
        %1706 = vmatprep.subr.bf16.mxu0 0
        %1707 = vmatpush1.bf16.msra.mxu0 %v1704
        %1708 = vmatprep.subr.bf16.mxu0 0
        %1709 = vmatpush1.bf16.msra.mxu0 0
        %1710 = vmatprep.subr.bf16.mxu0 0
        %1711 = vmatpush1.bf16.msra.mxu0 0
        %1712 = vmatprep.subr.bf16.mxu0 0
        %1713 = vmatpush1.bf16.msra.mxu0 0
        %1714 = vmatprep.subr.bf16.mxu0 0
        %1715 = vmatpush1.bf16.msra.mxu0 0
        %1716 = vmatprep.subr.bf16.mxu0 0
        %1717 = vmatpush1.bf16.msra.mxu0 0
        %1718 = vmatprep.subr.bf16.mxu0 0
        %1719 = vmatpush1.bf16.msra.mxu0 0
        %1720 = vmatprep.subr.bf16.mxu0 0
        %1721 = vmatpush1.bf16.msra.mxu0 0
        %1722 = vmatprep.subr.bf16.mxu0 0
        %1723 = vmatpush1.bf16.msra.mxu0 0
        %1724 = vmatprep.subr.bf16.mxu0 0
        %1725 = vmatpush1.bf16.msra.mxu0 0
        %1726 = vmatprep.subr.bf16.mxu0 0
        %1727 = vmatpush1.bf16.msra.mxu0 0
        %1728 = vmatprep.subr.bf16.mxu0 0
        %1729 = vmatpush1.bf16.msra.mxu0 0
        %1730 = vmatprep.subr.bf16.mxu0 0
        %1731 = vmatpush1.bf16.msra.mxu0 0
        %1732 = vmatprep.subr.bf16.mxu0 0
        %1733 = vmatpush1.bf16.msra.mxu0 0
        %1734 = vmatprep.subr.bf16.mxu0 0
        %1735 = vmatpush1.bf16.msra.mxu0 0
        %1736 = vmatprep.subr.bf16.mxu0 0
        %1737 = vmatpush1.bf16.msra.mxu0 0
        %1738 = vmatprep.mubr.bf16.mxu0 0
        %1739 = vmatmul.mubr.bf16.gmra.mrb[0].mxu0 %v1701
        %v1740 = vpop.f32.mrb[0].mxu0
        %v1741 = vadd.f32 0.0, %v1740
        %v1742 = vpop.f32.mrb[0].mxu0
        %v1743 = vpop.f32.mrb[0].mxu0
        %v1744 = vpop.f32.mrb[0].mxu0
        %1745 = vdwg.mxu0
        %v1747 = vsel %vm1255, %v1693, 0
        %v1750 = vsel %vm1510, %v1697, 0
        %1752 = vmatprep.subr.bf16.mxu0 0
        %1753 = vmatpush1.bf16.msra.mxu0 %v1750
        %1754 = vmatprep.subr.bf16.mxu0 0
        %1755 = vmatpush1.bf16.msra.mxu0 0
        %1756 = vmatprep.subr.bf16.mxu0 0
        %1757 = vmatpush1.bf16.msra.mxu0 0
        %1758 = vmatprep.subr.bf16.mxu0 0
        %1759 = vmatpush1.bf16.msra.mxu0 0
        %1760 = vmatprep.subr.bf16.mxu0 0
        %1761 = vmatpush1.bf16.msra.mxu0 0
        %1762 = vmatprep.subr.bf16.mxu0 0
        %1763 = vmatpush1.bf16.msra.mxu0 0
        %1764 = vmatprep.subr.bf16.mxu0 0
        %1765 = vmatpush1.bf16.msra.mxu0 0
        %1766 = vmatprep.subr.bf16.mxu0 0
        %1767 = vmatpush1.bf16.msra.mxu0 0
        %1768 = vmatprep.subr.bf16.mxu0 0
        %1769 = vmatpush1.bf16.msra.mxu0 0
        %1770 = vmatprep.subr.bf16.mxu0 0
        %1771 = vmatpush1.bf16.msra.mxu0 0
        %1772 = vmatprep.subr.bf16.mxu0 0
        %1773 = vmatpush1.bf16.msra.mxu0 0
        %1774 = vmatprep.subr.bf16.mxu0 0
        %1775 = vmatpush1.bf16.msra.mxu0 0
        %1776 = vmatprep.subr.bf16.mxu0 0
        %1777 = vmatpush1.bf16.msra.mxu0 0
        %1778 = vmatprep.subr.bf16.mxu0 0
        %1779 = vmatpush1.bf16.msra.mxu0 0
        %1780 = vmatprep.subr.bf16.mxu0 0
        %1781 = vmatpush1.bf16.msra.mxu0 0
        %1782 = vmatprep.subr.bf16.mxu0 0
        %1783 = vmatpush1.bf16.msra.mxu0 0
        %1784 = vmatprep.mubr.bf16.mxu0 0
        %1785 = vmatmul.mubr.bf16.gmra.mrb[0].mxu0 %v1747
        %v1786 = vpop.f32.mrb[0].mxu0
        %v1787 = vadd.f32 0.0, %v1786
        %v1788 = vpop.f32.mrb[0].mxu0
        %v1789 = vpop.f32.mrb[0].mxu0
        %v1790 = vpop.f32.mrb[0].mxu0
        %1791 = vdwg.mxu0
        %v1793 = vsel %vm1255, %v1694, 0
        %v1796 = vsel %vm1510, %v1698, 0
        %1798 = vmatprep.subr.bf16.mxu0 0
        %1799 = vmatpush1.bf16.msra.mxu0 %v1796
        %1800 = vmatprep.subr.bf16.mxu0 0
        %1801 = vmatpush1.bf16.msra.mxu0 0
        %1802 = vmatprep.subr.bf16.mxu0 0
        %1803 = vmatpush1.bf16.msra.mxu0 0
        %1804 = vmatprep.subr.bf16.mxu0 0
        %1805 = vmatpush1.bf16.msra.mxu0 0
        %1806 = vmatprep.subr.bf16.mxu0 0
        %1807 = vmatpush1.bf16.msra.mxu0 0
        %1808 = vmatprep.subr.bf16.mxu0 0
        %1809 = vmatpush1.bf16.msra.mxu0 0
        %1810 = vmatprep.subr.bf16.mxu0 0
        %1811 = vmatpush1.bf16.msra.mxu0 0
        %1812 = vmatprep.subr.bf16.mxu0 0
        %1813 = vmatpush1.bf16.msra.mxu0 0
        %1814 = vmatprep.subr.bf16.mxu0 0
        %1815 = vmatpush1.bf16.msra.mxu0 0
        %1816 = vmatprep.subr.bf16.mxu0 0
        %1817 = vmatpush1.bf16.msra.mxu0 0
        %1818 = vmatprep.subr.bf16.mxu0 0
        %1819 = vmatpush1.bf16.msra.mxu0 0
        %1820 = vmatprep.subr.bf16.mxu0 0
        %1821 = vmatpush1.bf16.msra.mxu0 0
        %1822 = vmatprep.subr.bf16.mxu0 0
        %1823 = vmatpush1.bf16.msra.mxu0 0
        %1824 = vmatprep.subr.bf16.mxu0 0
        %1825 = vmatpush1.bf16.msra.mxu0 0
        %1826 = vmatprep.subr.bf16.mxu0 0
        %1827 = vmatpush1.bf16.msra.mxu0 0
        %1828 = vmatprep.subr.bf16.mxu0 0
        %1829 = vmatpush1.bf16.msra.mxu0 0
        %1830 = vmatprep.mubr.bf16.mxu0 0
        %1831 = vmatmul.mubr.bf16.gmra.mrb[0].mxu0 %v1793
        %v1832 = vpop.f32.mrb[0].mxu0
        %v1833 = vadd.f32 0.0, %v1832
        %v1834 = vpop.f32.mrb[0].mxu0
        %v1835 = vpop.f32.mrb[0].mxu0
        %v1836 = vpop.f32.mrb[0].mxu0
        %1837 = vdwg.mxu0
        %v1839 = vsel %vm1255, %v1695, 0
        %v1842 = vsel %vm1510, %v1699, 0
        %1844 = vmatprep.subr.bf16.mxu0 0
        %1845 = vmatpush1.bf16.msra.mxu0 %v1842
        %1846 = vmatprep.subr.bf16.mxu0 0
        %1847 = vmatpush1.bf16.msra.mxu0 0
        %1848 = vmatprep.subr.bf16.mxu0 0
        %1849 = vmatpush1.bf16.msra.mxu0 0
        %1850 = vmatprep.subr.bf16.mxu0 0
        %1851 = vmatpush1.bf16.msra.mxu0 0
        %1852 = vmatprep.subr.bf16.mxu0 0
        %1853 = vmatpush1.bf16.msra.mxu0 0
        %1854 = vmatprep.subr.bf16.mxu0 0
        %1855 = vmatpush1.bf16.msra.mxu0 0
        %1856 = vmatprep.subr.bf16.mxu0 0
        %1857 = vmatpush1.bf16.msra.mxu0 0
        %1858 = vmatprep.subr.bf16.mxu0 0
        %1859 = vmatpush1.bf16.msra.mxu0 0
        %1860 = vmatprep.subr.bf16.mxu0 0
        %1861 = vmatpush1.bf16.msra.mxu0 0
        %1862 = vmatprep.subr.bf16.mxu0 0
        %1863 = vmatpush1.bf16.msra.mxu0 0
        %1864 = vmatprep.subr.bf16.mxu0 0
        %1865 = vmatpush1.bf16.msra.mxu0 0
        %1866 = vmatprep.subr.bf16.mxu0 0
        %1867 = vmatpush1.bf16.msra.mxu0 0
        %1868 = vmatprep.subr.bf16.mxu0 0
        %1869 = vmatpush1.bf16.msra.mxu0 0
        %1870 = vmatprep.subr.bf16.mxu0 0
        %1871 = vmatpush1.bf16.msra.mxu0 0
        %1872 = vmatprep.subr.bf16.mxu0 0
        %1873 = vmatpush1.bf16.msra.mxu0 0
        %1874 = vmatprep.subr.bf16.mxu0 0
        %1875 = vmatpush1.bf16.msra.mxu0 0
        %1876 = vmatprep.mubr.bf16.mxu0 0
        %1877 = vmatmul.mubr.bf16.gmra.mrb[0].mxu0 %v1839
        %v1878 = vpop.f32.mrb[0].mxu0
        %v1879 = vadd.f32 0.0, %v1878
        %v1880 = vpop.f32.mrb[0].mxu0
        %v1881 = vpop.f32.mrb[0].mxu0
        %v1882 = vpop.f32.mrb[0].mxu0
        %1883 = vdwg.mxu0
        %v1884 = vsel %vm631, %v1741, 0.0
        %v1885 = vsel %vm631, %v1787, 0.0
        %v1886 = vadd.f32 %v1884, %v1885
        %v1887 = vsel %vm631, %v1833, 0.0
        %v1888 = vadd.f32 %v1886, %v1887
        %v1889 = vsel %vm631, %v1879, 0.0
        %v1890 = vadd.f32 %v1888, %v1889
        %v1891 = vlaneseq
        %v1892 = vshrl.u32 %v1891, 7
        %v1893 = vsub.s32 4, %v1892
        %v1894 = vrot.slane %v401, %v1893
        %v1895 = vadd.f32 %v1890, %v1894
        %v1896 = vadd.f32 %v1895, %v434
        %v1897 = vsel %vm631, %v1896, 0.0
        %1898 = vadd.xlane.f32.xlu0 %v1897
        %v1899 = vpop.xlane.xlu0 %1898
        %v1900 = vrcp.pop 32.0
        %v1901 = vmul.f32 %v1899, %v1900
        %v1902 = vsub.f32 %v1896, %v1901
        %v1903 = vmul.f32 %v1902, %v1902
        %v1904 = vsel %vm631, %v1903, 0.0
        %1905 = vadd.xlane.f32.xlu0 %v1904
        %v1906 = vpop.xlane.xlu0 %1905
        %v1907 = vmul.f32 %v1906, %v1900
        %v1908 = vadd.f32 %v1907, 1e-05
        %v1909 = vrsqrt.pop %v1908
        %v1910 = vmul.f32 %v1902, %v1909
        %v1911 = vlaneseq
        %v1912 = vshrl.u32 %v1911, 7
        %v1913 = vsub.s32 5, %v1912
        %v1914 = vrot.slane %v401, %v1913
        %v1915 = vmul.f32 %v1910, %v1914
        %v1916 = vlaneseq
        %v1917 = vshrl.u32 %v1916, 7
        %v1918 = vsub.s32 6, %v1917
        %v1919 = vrot.slane %v401, %v1918
        %v1920 = vadd.f32 %v1915, %v1919
        %v1921 = vpack.c.bf16 %v1920, %v1920
        %v1922 = vld [vmem:[%s388] sm:$0xf]
        %v1923 = vld [vmem:[%s388 + $0x4] sm:$0xf]
        %v1924 = vld [vmem:[%s388 + $0x8] sm:$0xf]
        %v1925 = vld [vmem:[%s388 + $0xc] sm:$0xf]
        %v1926 = vlaneseq
        %v1927 = vshrl.u32 %v1926, 7
        %v1928 = vsub.s32 7, %v1927
        %v1929 = vrot.slane %v401, %v1928
        %v1934 = vunpack.c.l.b16 %v1922
        %v1935 = vunpack.c.l.b16 %v1923
        %v1936 = vunpack.c.l.b16 %v1924
        %v1937 = vunpack.c.l.b16 %v1925
        %v1938 = vpack.c.b16 %v1935, %v1934
        %v1939 = vpack.c.b16 %v1937, %v1936
        %v1943 = vsel %vm631, %v1921, 0
        %1945 = vmatprep.subr.bf16.mxu0 0
        %1946 = vmatpush1.bf16.msra.mxu0 %v1938
        %1947 = vmatprep.subr.bf16.mxu0 0
        %1948 = vmatpush1.bf16.msra.mxu0 %v1939
        %1949 = vmatprep.subr.bf16.mxu0 0
        %1950 = vmatpush1.bf16.msra.mxu0 0
        %1951 = vmatprep.subr.bf16.mxu0 0
        %1952 = vmatpush1.bf16.msra.mxu0 0
        %1953 = vmatprep.subr.bf16.mxu0 0
        %1954 = vmatpush1.bf16.msra.mxu0 0
        %1955 = vmatprep.subr.bf16.mxu0 0
        %1956 = vmatpush1.bf16.msra.mxu0 0
        %1957 = vmatprep.subr.bf16.mxu0 0
        %1958 = vmatpush1.bf16.msra.mxu0 0
        %1959 = vmatprep.subr.bf16.mxu0 0
        %1960 = vmatpush1.bf16.msra.mxu0 0
        %1961 = vmatprep.subr.bf16.mxu0 0
        %1962 = vmatpush1.bf16.msra.mxu0 0
        %1963 = vmatprep.subr.bf16.mxu0 0
        %1964 = vmatpush1.bf16.msra.mxu0 0
        %1965 = vmatprep.subr.bf16.mxu0 0
        %1966 = vmatpush1.bf16.msra.mxu0 0
        %1967 = vmatprep.subr.bf16.mxu0 0
        %1968 = vmatpush1.bf16.msra.mxu0 0
        %1969 = vmatprep.subr.bf16.mxu0 0
        %1970 = vmatpush1.bf16.msra.mxu0 0
        %1971 = vmatprep.subr.bf16.mxu0 0
        %1972 = vmatpush1.bf16.msra.mxu0 0
        %1973 = vmatprep.subr.bf16.mxu0 0
        %1974 = vmatpush1.bf16.msra.mxu0 0
        %1975 = vmatprep.subr.bf16.mxu0 0
        %1976 = vmatpush1.bf16.msra.mxu0 0
        %1977 = vmatprep.mubr.bf16.mxu0 0
        %1978 = vmatmul.mubr.bf16.gmra.mrb[0].mxu0 %v1943
        %v1979 = vpop.f32.mrb[0].mxu0
        %v1980 = vadd.f32 %v1929, %v1979
        %v1981 = vpop.f32.mrb[0].mxu0
        %v1982 = vpop.f32.mrb[0].mxu0
        %v1983 = vpop.f32.mrb[0].mxu0
        %1984 = vdwg.mxu0
        %v1985 = vmul.f32 %v1980, 0.5
        %v1986 = vmul.f32 %v1980, 0.044715
        %v1987 = vmul.f32 %v1986, %v1980
        %v1988 = vmul.f32 %v1987, %v1980
        %v1989 = vadd.f32 %v1980, %v1988
        %v1990 = vmul.f32 %v1989, 0.7978846
        %v1991 = vtanh.pop %v1990
        %v1992 = vadd.f32 %v1991, 1.0
        %v1993 = vmul.f32 %v1985, %v1992
        %v1994 = vpack.c.bf16 %v1993, %v1993
        %v1995 = vld [vmem:[%s393] sm:$0xf]
        %v1996 = vld [vmem:[%s393 + $0x4] sm:$0xf]
        %v1997 = vld [vmem:[%s393 + $0x8] sm:$0xf]
        %v1998 = vld [vmem:[%s393 + $0xc] sm:$0xf]
        %v1999 = vld [vmem:[%s393 + $0x10] sm:$0xf]
        %v2000 = vld [vmem:[%s393 + $0x14] sm:$0xf]
        %v2001 = vld [vmem:[%s393 + $0x18] sm:$0xf]
        %v2002 = vld [vmem:[%s393 + $0x1c] sm:$0xf]
        %v2003 = vlaneseq
        %v2004 = vshrl.u32 %v2003, 7
        %v2005 = vsub.s32 0, %v2004
        %v2006 = vrot.slane %v402, %v2005
        %v2015 = vunpack.c.l.b16 %v1995
        %v2016 = vunpack.c.l.b16 %v1996
        %v2017 = vunpack.c.l.b16 %v1997
        %v2018 = vunpack.c.l.b16 %v1998
        %v2019 = vunpack.c.l.b16 %v1999
        %v2020 = vunpack.c.l.b16 %v2000
        %v2021 = vunpack.c.l.b16 %v2001
        %v2022 = vunpack.c.l.b16 %v2002
        %v2023 = vpack.c.b16 %v2016, %v2015
        %v2024 = vpack.c.b16 %v2018, %v2017
        %v2025 = vpack.c.b16 %v2020, %v2019
        %v2026 = vpack.c.b16 %v2022, %v2021
        %vm2031 = vcmask 523264
        %v2033 = vsel %vm2031, %v1994, 0
        %2035 = vmatprep.subr.bf16.mxu0 0
        %2036 = vmatpush1.bf16.msra.mxu0 %v2023
        %2037 = vmatprep.subr.bf16.mxu0 0
        %2038 = vmatpush1.bf16.msra.mxu0 %v2024
        %2039 = vmatprep.subr.bf16.mxu0 0
        %2040 = vmatpush1.bf16.msra.mxu0 %v2025
        %2041 = vmatprep.subr.bf16.mxu0 0
        %2042 = vmatpush1.bf16.msra.mxu0 %v2026
        %2043 = vmatprep.subr.bf16.mxu0 0
        %2044 = vmatpush1.bf16.msra.mxu0 0
        %2045 = vmatprep.subr.bf16.mxu0 0
        %2046 = vmatpush1.bf16.msra.mxu0 0
        %2047 = vmatprep.subr.bf16.mxu0 0
        %2048 = vmatpush1.bf16.msra.mxu0 0
        %2049 = vmatprep.subr.bf16.mxu0 0
        %2050 = vmatpush1.bf16.msra.mxu0 0
        %2051 = vmatprep.subr.bf16.mxu0 0
        %2052 = vmatpush1.bf16.msra.mxu0 0
        %2053 = vmatprep.subr.bf16.mxu0 0
        %2054 = vmatpush1.bf16.msra.mxu0 0
        %2055 = vmatprep.subr.bf16.mxu0 0
        %2056 = vmatpush1.bf16.msra.mxu0 0
        %2057 = vmatprep.subr.bf16.mxu0 0
        %2058 = vmatpush1.bf16.msra.mxu0 0
        %2059 = vmatprep.subr.bf16.mxu0 0
        %2060 = vmatpush1.bf16.msra.mxu0 0
        %2061 = vmatprep.subr.bf16.mxu0 0
        %2062 = vmatpush1.bf16.msra.mxu0 0
        %2063 = vmatprep.subr.bf16.mxu0 0
        %2064 = vmatpush1.bf16.msra.mxu0 0
        %2065 = vmatprep.subr.bf16.mxu0 0
        %2066 = vmatpush1.bf16.msra.mxu0 0
        %2067 = vmatprep.mubr.bf16.mxu0 0
        %2068 = vmatmul.mubr.bf16.gmra.mrb[0].mxu0 %v2033
        %v2069 = vpop.f32.mrb[0].mxu0
        %v2070 = vadd.f32 %v2006, %v2069
        %v2071 = vpop.f32.mrb[0].mxu0
        %v2072 = vpop.f32.mrb[0].mxu0
        %v2073 = vpop.f32.mrb[0].mxu0
        %2074 = vdwg.mxu0
        %v2075 = vadd.f32 %v2070, %v1920
        %v2076 = vsel %vm631, %v2075, 0.0
        %2077 = vadd.xlane.f32.xlu0 %v2076
        %v2078 = vpop.xlane.xlu0 %2077
        %v2079 = vmul.f32 %v2078, %v1900
        %v2080 = vsub.f32 %v2075, %v2079
        %v2081 = vmul.f32 %v2080, %v2080
        %v2082 = vsel %vm631, %v2081, 0.0
        %2083 = vadd.xlane.f32.xlu0 %v2082
        %v2084 = vpop.xlane.xlu0 %2083
        %v2085 = vmul.f32 %v2084, %v1900
        %v2086 = vadd.f32 %v2085, 1e-05
        %v2087 = vrsqrt.pop %v2086
        %v2088 = vmul.f32 %v2080, %v2087
        %v2089 = vlaneseq
        %v2090 = vshrl.u32 %v2089, 7
        %v2091 = vsub.s32 1, %v2090
        %v2092 = vrot.slane %v402, %v2091
        %v2093 = vmul.f32 %v2088, %v2092
        %v2094 = vlaneseq
        %v2095 = vshrl.u32 %v2094, 7
        %v2096 = vsub.s32 2, %v2095
        %v2097 = vrot.slane %v402, %v2096
        %v2098 = vadd.f32 %v2093, %v2097
        %2099 = vst.msk [vmem:[#allocation2] sm:$0xff] %vm631, %v2098
        %p2100 = scmp.eq.s32.totalorder %s26, 1
        // Predicated region
        $region53: #{roberta_forward.1} parent=47 // pred_check
          %p2101 = pneg %p2100
        $region54: #{roberta_forward.1} parent=47 // pred_check_branch
          %2103 = sbr.rel (%p2101) target = $region56
        $region55: #{roberta_forward.1} parent=47 // pred_region
          %vm2104 = vcmask 253952
          %2105 = vst.msk [vmem:[%s366] sm:$0x1] %vm2104, %v2098
        $region56: #{roberta_forward.1} parent=47 // pred_fallthru
          _
        %s2106 = sand.u32 %s223, 1
        %s2107 = scalar_lea.sflag [#allocation4], %s2106
        %s2108 = sand.u32 %s223, 1
        %s2109 = scalar_lea.vmem [#allocation3], %s2108
        // Predicated region
        $region57: #{roberta_forward.1} parent=47 // pred_check
          %p2110 = pneg %p233
        $region58: #{roberta_forward.1} parent=47 // pred_check_branch
          %2112 = sbr.rel (%p2110) target = $region60
        $region59: #{roberta_forward.1} parent=47 // pred_region
          %s2114 = ssub.s32 16, 16
          %2115 = vsyncadd %s2107, %s2114
          %s2116 = smul.addr %s25, 16
          %s2117 = scalar_lea.hbm %s7, %s2116
          %s2119 = sshll.u32 %s2109, 4
          %s2120 = int_to_ptr.vmem [resolvable:$true] %s2119
          %2122 = dma.vmem_to_hbm [thread:$0]  %s2120, 16, %s2117, %s2107
        $region60: #{roberta_forward.1} parent=47 // pred_fallthru
          _
      $region48: #{roberta_forward.1} parent=5 // pred_fallthru
        _
      %p2123 = scmp.le.s32.totalorder 2, %s16
      // Predicated region
      $region61: #{roberta_forward.1} parent=5 // pred_check
        %p2124 = pneg %p2123
      $region62: #{roberta_forward.1} parent=5 // pred_check_branch
        %2126 = sbr.rel (%p2124) target = $region64
      $region63: #{roberta_forward.1} parent=5 // pred_region
        %s2127 = ssub.s32 %s16, 2
        // Predicated region
        $region65: #{roberta_forward.1} parent=63 // pred_check
          %p2128 = pneg %p239
        $region66: #{roberta_forward.1} parent=63 // pred_check_branch
          %2130 = sbr.rel (%p2128) target = $region68
        $region67: #{roberta_forward.1} parent=63 // pred_region
          %s2131 = sand.u32 %s224, 1
          %s2132 = scalar_lea.sflag [#allocation4], %s2131
          %s2133 = sand.u32 %s224, 1
          %s2134 = scalar_lea.vmem [#allocation3], %s2133
          %2135 = dma.done %s2132, 16
        $region68: #{roberta_forward.1} parent=63 // pred_fallthru
          _
      $region64: #{roberta_forward.1} parent=5 // pred_fallthru
        _
    $region6: #{roberta_forward.1} parent=1 // loop_footer
      %s20 = sadd.s32 1, %s16
    $region7: #{roberta_forward.1} parent=1 // loop_footer_branch
      %15 = sbr.rel target = $region3
    $region8: #{roberta_forward.1} parent=1 // loop_exit
      _
    %2136 = vsyncpa [#allocation4], 1
    %s2137 = scalar_lea.sflag [#allocation4], 1
    %2138 = vsyncpa %s2137, 1

</llo_original>
